<compile_context>
chip_gen: v7x
topology: tpu7x:2x2x1
jax: 0.10.0
libtpu: 0.0.40
codegen_flags: <defaults>
</compile_context>

<pallas_src>
import jax
import jax.numpy as jnp
from jax.experimental import pallas as pl
from jax.experimental.pallas import tpu as pltpu


def _make_head_kernel(TH, Wp, C1):
    rows = TH * Wp                # output rows of one H-tile (on the padded-width grid)
    rows_p = (TH + 1) * Wp        # per-kh slab length (covers the dw<=2 row shift)

    def kernel(x_ref, w_ref, b_ref, o_ref):
        # x_ref: ((TH+3)*Wp, Cin) bf16  halo'd H-tile, flattened on the padded-width grid
        # w_ref: (3, Cin, 3*C1)   bf16  per-kh weights, kw taps packed along the output dim
        # b_ref: (1, C1)          f32   fused bias (zeros on the iou channels)
        # o_ref: (rows, C1)       f32   fused output tile; doubles as the VMEM accumulator
        o_ref[...] = jnp.broadcast_to(b_ref[...], (rows, C1))          # bias-in-init
        for dh in range(3):       # static unroll -> exactly 3 MXU matmuls per tile
            # Constant, pack-aligned row window (Wp is even): no strided copy.
            slab = x_ref[pl.ds(dh * Wp, rows_p), :]                    # (rows_p, Cin) bf16
            z = jnp.dot(slab, w_ref[dh],
                        preferred_element_type=jnp.float32)            # (rows_p, 3*C1) f32
            # kw shift-add on the f32 result: 3 C1-wide column slices at row offsets 0/1/2.
            o_ref[...] += (z[0:rows, 0:C1]
                           + z[1:1 + rows, C1:2 * C1]
                           + z[2:2 + rows, 2 * C1:3 * C1])

    return kernel


def prepare_head_params(params, use_dir=True):
    """One-time fusion of the four conv heads into a single 3x3 conv (call once, reuse)."""
    w_box, b_box = params['conv_box']          # (num_pred, Cin, 1, 1), (num_pred,)
    w_cls, b_cls = params['conv_cls']
    num_pred, num_cls = w_box.shape[0], w_cls.shape[0]
    Cin = w_box.shape[1]
    head_w = [w_box[:, :, 0, 0].T, w_cls[:, :, 0, 0].T]
    head_b = [b_box, b_cls]
    num_dir = 0
    if use_dir:
        w_dir, b_dir = params['conv_dir']
        num_dir = w_dir.shape[0]
        head_w.append(w_dir[:, :, 0, 0].T)
        head_b.append(b_dir)

    w_iou = params['conv_iou']                 # (2, 128, 3, 3), bias=False
    n_iou = w_iou.shape[0]
    assert w_iou.shape[1] == Cin, "conv_iou hardcodes 128 input channels"

    c_heads = num_pred + num_cls + num_dir
    C1 = c_heads + n_iou

    # (kh, kw, Cin, C1): iou weights live in the last n_iou columns of every tap, the 1x1
    # heads only in the centre tap.  Then pack kw along the output dim -> (3, Cin, 3*C1).
    w_taps = jnp.zeros((3, 3, Cin, C1), jnp.float32)
    w_taps = w_taps.at[:, :, :, c_heads:].set(jnp.transpose(w_iou, (2, 3, 1, 0)))
    w_taps = w_taps.at[1, 1, :, :c_heads].set(jnp.concatenate(head_w, axis=1))
    w_packed = jnp.transpose(w_taps, (0, 2, 1, 3)).reshape(3, Cin, 3 * C1).astype(jnp.bfloat16)

    bias = jnp.concatenate(head_b + [jnp.zeros((n_iou,), jnp.float32)])
    bias = bias.astype(jnp.float32)[None, :]                            # (1, C1)

    dims = dict(Cin=Cin, num_pred=num_pred, num_cls=num_cls, num_dir=num_dir,
                n_iou=n_iou, c_heads=c_heads, C1=C1, use_dir=use_dir)
    return w_packed, bias, dims


def head_forward(x_nchw, prepared, tile_h=None):
    """Pallas Head.forward. Returns dict of NHWC (channels-last) predictions."""
    w_packed, bias, d = prepared
    Cin, C1, c_heads = d['Cin'], d['C1'], d['c_heads']
    N, Cx, H, W = x_nchw.shape
    assert Cx == Cin

    # Padded width: left=1, right>=1, rounded up so Wp is even (keeps the bf16 kh-slab
    # slice starts pack-aligned).
    Wp = W + 2 + ((W + 2) % 2)

    # H-tile height: ~4k output rows per tile keeps the double-buffered VMEM footprint in
    # the low MB and yields several grid steps (pipeline depth / v7x 2-core parallelism).
    if tile_h is None:
        tile_h = max(8, -(-4096 // Wp))
    TH = max(1, min(tile_h, H))
    n_t = -(-H // TH)
    H_t = n_t * TH

    # Wrapper layout pass: NHWC bf16, pad (top=1, bottom=H_t-H+2, left=1, right), then gather
    # halo'd H-tiles so the kernel-side blocks are plain non-overlapping Blocked specs.
    x = jnp.transpose(x_nchw, (0, 2, 3, 1)).astype(jnp.bfloat16)                 # (N,H,W,Cin)
    x = jnp.pad(x, ((0, 0), (1, H_t - H + 2), (1, Wp - W - 1), (0, 0)))          # (N,H_t+3,Wp,Cin)
    row_idx = jnp.arange(n_t)[:, None] * TH + jnp.arange(TH + 3)[None, :]        # (n_t, TH+3)
    x_tiles = x[:, row_idx].reshape(N, n_t, (TH + 3) * Wp, Cin)                  # halo'd tiles

    rows = TH * Wp
    L_tile = (TH + 3) * Wp
    kernel = _make_head_kernel(TH, Wp, C1)

    # VMEM budget from actual block bytes (double-buffered in/out + resident weights + f32
    # matmul temps + slack), capped at 40 MiB so v7x (64 MiB physical) keeps headroom.
    in_b = L_tile * Cin * 2
    out_b = rows * C1 * 4
    tmp_b = (TH + 1) * Wp * 3 * C1 * 4
    budget = 2 * (in_b + out_b) + 3 * tmp_b + 3 * Cin * 3 * C1 * 2 + (2 << 20)
    vmem_limit = int(min(max(budget, 32 << 20), 40 << 20))

    out = pl.pallas_call(
        kernel,
        out_shape=jax.ShapeDtypeStruct((N, n_t, rows, C1), jnp.float32),
        grid_spec=pltpu.PrefetchScalarGridSpec(
            num_scalar_prefetch=0,
            grid=(N, n_t),
            in_specs=[
                pl.BlockSpec((None, None, L_tile, Cin), lambda n, t: (n, t, 0, 0)),
                pl.BlockSpec((3, Cin, 3 * C1), lambda n, t: (0, 0, 0)),   # resident weights
                pl.BlockSpec((1, C1), lambda n, t: (0, 0)),               # resident bias
            ],
            out_specs=pl.BlockSpec((None, None, rows, C1), lambda n, t: (n, t, 0, 0)),
        ),
        compiler_params=pltpu.CompilerParams(
            dimension_semantics=("parallel", "parallel"),
            vmem_limit_bytes=vmem_limit,
        ),
    )(x_tiles, w_packed, bias)

    # Drop padded rows / junk right columns and split the fused channels (cheap layout
    # plumbing on the small output tensor; XLA fuses these slices away).
    out = out.reshape(N, H_t, Wp, C1)[:, :H, :W, :]
    num_pred, num_cls = d['num_pred'], d['num_cls']
    ret = {'box_preds': out[..., :num_pred],
           'cls_preds': out[..., num_pred:num_pred + num_cls]}
    if d['use_dir']:
        ret['dir_cls_preds'] = out[..., num_pred + num_cls:c_heads]
    ret['iou_preds'] = out[..., c_heads:]
    return ret


def _conv_ref(x_nchw, w, b, padding):
    out = jax.lax.conv_general_dilated(
        x_nchw, w, window_strides=(1, 1), padding=padding,
        dimension_numbers=('NCHW', 'OIHW', 'NCHW'),
        precision=jax.lax.Precision.HIGHEST)
    if b is not None:
        out = out + b[None, :, None, None]
    return jnp.transpose(out, (0, 2, 3, 1))


if __name__ == "__main__":
    # Small, module-consistent shapes (conv_iou hardcodes 128 input channels).
    N, Cin, H, W = 2, 128, 16, 16
    num_pred, num_cls, num_dir = 14, 2, 4     # e.g. 2 anchors * 7 box params, 2 classes

    key = jax.random.PRNGKey(0)
    ks = jax.random.split(key, 8)
    x = jax.random.normal(ks[0], (N, Cin, H, W), jnp.float32)

    params = {
        'conv_box': (0.05 * jax.random.normal(ks[1], (num_pred, Cin, 1, 1), jnp.float32),
                     0.05 * jax.random.normal(ks[2], (num_pred,), jnp.float32)),
        'conv_cls': (0.05 * jax.random.normal(ks[3], (num_cls, Cin, 1, 1), jnp.float32),
                     0.05 * jax.random.normal(ks[4], (num_cls,), jnp.float32)),
        'conv_dir': (0.05 * jax.random.normal(ks[5], (num_dir, Cin, 1, 1), jnp.float32),
                     0.05 * jax.random.normal(ks[6], (num_dir,), jnp.float32)),
        'conv_iou': 0.05 * jax.random.normal(ks[7], (2, 128, 3, 3), jnp.float32),
    }

    prepared = prepare_head_params(params, use_dir=True)   # hoisted one-time weight fusion

    # Reference with the same bf16-rounded operands as the kernel's MXU path (biases in f32),
    # so the comparison isolates kernel correctness from the intentional bf16 input cast.
    r = lambda a: a.astype(jnp.bfloat16).astype(jnp.float32)
    xb = r(x)
    ref = {
        'box_preds': _conv_ref(xb, r(params['conv_box'][0]), params['conv_box'][1],
                               [(0, 0), (0, 0)]),
        'cls_preds': _conv_ref(xb, r(params['conv_cls'][0]), params['conv_cls'][1],
                               [(0, 0), (0, 0)]),
        'dir_cls_preds': _conv_ref(xb, r(params['conv_dir'][0]), params['conv_dir'][1],
                                   [(0, 0), (0, 0)]),
        'iou_preds': _conv_ref(xb, r(params['conv_iou']), None, [(1, 1), (1, 1)]),
    }

    # Exercise single-tile, even-divisor tiling, and non-divisor (padded H) tiling paths.
    for th in (None, 8, 5):
        out = jax.block_until_ready(head_forward(x, prepared, tile_h=th))
        for name in ref:
            assert out[name].shape == ref[name].shape, (name, th, out[name].shape, ref[name].shape)
            assert jnp.allclose(out[name], ref[name], atol=2e-3, rtol=2e-3), (name, th)

    print("KERNEL_OK")
</pallas_src>

<mosaic_0001>
module attributes {stable_mosaic.version = 11 : i64} {
  func.func @kernel(%arg0: i32, %arg1: i32, %arg2: memref<1x1x342x128xbf16, #tpu.memory_space<vmem>>, %arg3: memref<3x128x66xbf16, #tpu.memory_space<vmem>>, %arg4: memref<1x22xf32, #tpu.memory_space<vmem>>, %arg5: memref<1x1x288x22xf32, #tpu.memory_space<vmem>>) attributes {dimension_semantics = [#tpu.dimension_semantics<parallel>, #tpu.dimension_semantics<parallel>], iteration_bounds = array<i64: 2, 1>, scalar_prefetch = 0 : i64, scratch_operands = 0 : i64, tpu.core_type = #tpu.core_type<tc>, window_params = [{transform_indices = @transform_0, window_bounds = array<i64: 1, 1, 342, 128>}, {pipeline_mode = #tpu.pipeline_mode<synchronous>, transform_indices = @transform_1, window_bounds = array<i64: 3, 128, 66>}, {pipeline_mode = #tpu.pipeline_mode<synchronous>, transform_indices = @transform_2, window_bounds = array<i64: 1, 22>}, {transform_indices = @transform_3, window_bounds = array<i64: 1, 1, 288, 22>}]} {
    %c0 = arith.constant 0 : index
    %c0_0 = arith.constant 0 : index
    %0 = vector.load %arg4[%c0, %c0_0] : memref<1x22xf32, #tpu.memory_space<vmem>>, vector<1x22xf32>
    %1 = vector.shape_cast %0 : vector<1x22xf32> to vector<1x22xf32>
    %2 = vector.broadcast %1 : vector<1x22xf32> to vector<288x22xf32>
    %c0_1 = arith.constant 0 : index
    %c0_2 = arith.constant 0 : index
    %c0_3 = arith.constant 0 : index
    %c0_4 = arith.constant 0 : index
    %3 = vector.load %arg5[%c0_1, %c0_2, %c0_3, %c0_4] : memref<1x1x288x22xf32, #tpu.memory_space<vmem>>, vector<1x1x288x22xf32>
    %4 = vector.shape_cast %3 : vector<1x1x288x22xf32> to vector<288x22xf32>
    %5 = vector.shape_cast %2 : vector<288x22xf32> to vector<1x1x288x22xf32>
    tpu.vector_store %arg5[%c0_1, %c0_2, %c0_3, %c0_4], %5 {strides = array<i32>} : memref<1x1x288x22xf32, #tpu.memory_space<vmem>>, vector<1x1x288x22xf32>,
    %c0_5 = arith.constant 0 : index
    %c0_6 = arith.constant 0 : index
    %c0_7 = arith.constant 0 : index
    %c0_8 = arith.constant 0 : index
    %6 = vector.load %arg2[%c0_5, %c0_6, %c0_7, %c0_8] : memref<1x1x342x128xbf16, #tpu.memory_space<vmem>>, vector<1x1x306x128xbf16>
    %7 = vector.shape_cast %6 : vector<1x1x306x128xbf16> to vector<306x128xbf16>
    %c0_9 = arith.constant 0 : index
    %c0_10 = arith.constant 0 : index
    %c0_11 = arith.constant 0 : index
    %8 = vector.load %arg3[%c0_9, %c0_10, %c0_11] : memref<3x128x66xbf16, #tpu.memory_space<vmem>>, vector<1x128x66xbf16>
    %9 = vector.shape_cast %8 : vector<1x128x66xbf16> to vector<128x66xbf16>
    %cst = arith.constant dense<0.000000e+00> : vector<306x66xf32>
    %10 = tpu.matmul %7, %9, %cst {dimension_numbers = #tpu.dot_dimension_numbers<[1], [0], [0], [1], [0, 0, 1, 1], [], []>} : vector<306x128xbf16>, vector<128x66xbf16>, vector<306x66xf32> -> vector<306x66xf32>
    %c0_12 = arith.constant 0 : index
    %c0_13 = arith.constant 0 : index
    %c0_14 = arith.constant 0 : index
    %c0_15 = arith.constant 0 : index
    %11 = vector.load %arg5[%c0_12, %c0_13, %c0_14, %c0_15] : memref<1x1x288x22xf32, #tpu.memory_space<vmem>>, vector<1x1x288x22xf32>
    %12 = vector.shape_cast %11 : vector<1x1x288x22xf32> to vector<288x22xf32>
    %13 = vector.extract_strided_slice %10 {offsets = [0, 0], sizes = [288, 22], strides = [1, 1]} : vector<306x66xf32> to vector<288x22xf32>
    %14 = vector.extract_strided_slice %10 {offsets = [1, 22], sizes = [288, 22], strides = [1, 1]} : vector<306x66xf32> to vector<288x22xf32>
    %15 = arith.addf %13, %14 : vector<288x22xf32>
    %16 = vector.extract_strided_slice %10 {offsets = [2, 44], sizes = [288, 22], strides = [1, 1]} : vector<306x66xf32> to vector<288x22xf32>
    %17 = arith.addf %15, %16 : vector<288x22xf32>
    %18 = arith.addf %12, %17 : vector<288x22xf32>
    %c0_16 = arith.constant 0 : index
    %c0_17 = arith.constant 0 : index
    %c0_18 = arith.constant 0 : index
    %c0_19 = arith.constant 0 : index
    %19 = vector.load %arg5[%c0_16, %c0_17, %c0_18, %c0_19] : memref<1x1x288x22xf32, #tpu.memory_space<vmem>>, vector<1x1x288x22xf32>
    %20 = vector.shape_cast %19 : vector<1x1x288x22xf32> to vector<288x22xf32>
    %21 = vector.shape_cast %18 : vector<288x22xf32> to vector<1x1x288x22xf32>
    tpu.vector_store %arg5[%c0_16, %c0_17, %c0_18, %c0_19], %21 {strides = array<i32>} : memref<1x1x288x22xf32, #tpu.memory_space<vmem>>, vector<1x1x288x22xf32>,
    %c0_20 = arith.constant 0 : index
    %c0_21 = arith.constant 0 : index
    %c18 = arith.constant 18 : index
    %c0_22 = arith.constant 0 : index
    %22 = vector.load %arg2[%c0_20, %c0_21, %c18, %c0_22] : memref<1x1x342x128xbf16, #tpu.memory_space<vmem>>, vector<1x1x306x128xbf16>
    %23 = vector.shape_cast %22 : vector<1x1x306x128xbf16> to vector<306x128xbf16>
    %c1 = arith.constant 1 : index
    %c0_23 = arith.constant 0 : index
    %c0_24 = arith.constant 0 : index
    %24 = vector.load %arg3[%c1, %c0_23, %c0_24] : memref<3x128x66xbf16, #tpu.memory_space<vmem>>, vector<1x128x66xbf16>
    %25 = vector.shape_cast %24 : vector<1x128x66xbf16> to vector<128x66xbf16>
    %cst_25 = arith.constant dense<0.000000e+00> : vector<306x66xf32>
    %26 = tpu.matmul %23, %25, %cst_25 {dimension_numbers = #tpu.dot_dimension_numbers<[1], [0], [0], [1], [0, 0, 1, 1], [], []>} : vector<306x128xbf16>, vector<128x66xbf16>, vector<306x66xf32> -> vector<306x66xf32>
    %c0_26 = arith.constant 0 : index
    %c0_27 = arith.constant 0 : index
    %c0_28 = arith.constant 0 : index
    %c0_29 = arith.constant 0 : index
    %27 = vector.load %arg5[%c0_26, %c0_27, %c0_28, %c0_29] : memref<1x1x288x22xf32, #tpu.memory_space<vmem>>, vector<1x1x288x22xf32>
    %28 = vector.shape_cast %27 : vector<1x1x288x22xf32> to vector<288x22xf32>
    %29 = vector.extract_strided_slice %26 {offsets = [0, 0], sizes = [288, 22], strides = [1, 1]} : vector<306x66xf32> to vector<288x22xf32>
    %30 = vector.extract_strided_slice %26 {offsets = [1, 22], sizes = [288, 22], strides = [1, 1]} : vector<306x66xf32> to vector<288x22xf32>
    %31 = arith.addf %29, %30 : vector<288x22xf32>
    %32 = vector.extract_strided_slice %26 {offsets = [2, 44], sizes = [288, 22], strides = [1, 1]} : vector<306x66xf32> to vector<288x22xf32>
    %33 = arith.addf %31, %32 : vector<288x22xf32>
    %34 = arith.addf %28, %33 : vector<288x22xf32>
    %c0_30 = arith.constant 0 : index
    %c0_31 = arith.constant 0 : index
    %c0_32 = arith.constant 0 : index
    %c0_33 = arith.constant 0 : index
    %35 = vector.load %arg5[%c0_30, %c0_31, %c0_32, %c0_33] : memref<1x1x288x22xf32, #tpu.memory_space<vmem>>, vector<1x1x288x22xf32>
    %36 = vector.shape_cast %35 : vector<1x1x288x22xf32> to vector<288x22xf32>
    %37 = vector.shape_cast %34 : vector<288x22xf32> to vector<1x1x288x22xf32>
    tpu.vector_store %arg5[%c0_30, %c0_31, %c0_32, %c0_33], %37 {strides = array<i32>} : memref<1x1x288x22xf32, #tpu.memory_space<vmem>>, vector<1x1x288x22xf32>,
    %c0_34 = arith.constant 0 : index
    %c0_35 = arith.constant 0 : index
    %c36 = arith.constant 36 : index
    %c0_36 = arith.constant 0 : index
    %38 = vector.load %arg2[%c0_34, %c0_35, %c36, %c0_36] : memref<1x1x342x128xbf16, #tpu.memory_space<vmem>>, vector<1x1x306x128xbf16>
    %39 = vector.shape_cast %38 : vector<1x1x306x128xbf16> to vector<306x128xbf16>
    %c2 = arith.constant 2 : index
    %c0_37 = arith.constant 0 : index
    %c0_38 = arith.constant 0 : index
    %40 = vector.load %arg3[%c2, %c0_37, %c0_38] : memref<3x128x66xbf16, #tpu.memory_space<vmem>>, vector<1x128x66xbf16>
    %41 = vector.shape_cast %40 : vector<1x128x66xbf16> to vector<128x66xbf16>
    %cst_39 = arith.constant dense<0.000000e+00> : vector<306x66xf32>
    %42 = tpu.matmul %39, %41, %cst_39 {dimension_numbers = #tpu.dot_dimension_numbers<[1], [0], [0], [1], [0, 0, 1, 1], [], []>} : vector<306x128xbf16>, vector<128x66xbf16>, vector<306x66xf32> -> vector<306x66xf32>
    %c0_40 = arith.constant 0 : index
    %c0_41 = arith.constant 0 : index
    %c0_42 = arith.constant 0 : index
    %c0_43 = arith.constant 0 : index
    %43 = vector.load %arg5[%c0_40, %c0_41, %c0_42, %c0_43] : memref<1x1x288x22xf32, #tpu.memory_space<vmem>>, vector<1x1x288x22xf32>
    %44 = vector.shape_cast %43 : vector<1x1x288x22xf32> to vector<288x22xf32>
    %45 = vector.extract_strided_slice %42 {offsets = [0, 0], sizes = [288, 22], strides = [1, 1]} : vector<306x66xf32> to vector<288x22xf32>
    %46 = vector.extract_strided_slice %42 {offsets = [1, 22], sizes = [288, 22], strides = [1, 1]} : vector<306x66xf32> to vector<288x22xf32>
    %47 = arith.addf %45, %46 : vector<288x22xf32>
    %48 = vector.extract_strided_slice %42 {offsets = [2, 44], sizes = [288, 22], strides = [1, 1]} : vector<306x66xf32> to vector<288x22xf32>
    %49 = arith.addf %47, %48 : vector<288x22xf32>
    %50 = arith.addf %44, %49 : vector<288x22xf32>
    %c0_44 = arith.constant 0 : index
    %c0_45 = arith.constant 0 : index
    %c0_46 = arith.constant 0 : index
    %c0_47 = arith.constant 0 : index
    %51 = vector.load %arg5[%c0_44, %c0_45, %c0_46, %c0_47] : memref<1x1x288x22xf32, #tpu.memory_space<vmem>>, vector<1x1x288x22xf32>
    %52 = vector.shape_cast %51 : vector<1x1x288x22xf32> to vector<288x22xf32>
    %53 = vector.shape_cast %50 : vector<288x22xf32> to vector<1x1x288x22xf32>
    tpu.vector_store %arg5[%c0_44, %c0_45, %c0_46, %c0_47], %53 {strides = array<i32>} : memref<1x1x288x22xf32, #tpu.memory_space<vmem>>, vector<1x1x288x22xf32>,
    return
  }
  func.func @transform_0(%arg0: i32, %arg1: i32) -> (i32, i32, i32, i32) {
    %c0_i32 = arith.constant 0 : i32
    %c0_i32_0 = arith.constant 0 : i32
    %c0_i32_1 = arith.constant 0 : i32
    return %arg0, %arg1, %c0_i32, %c0_i32_0 : i32, i32, i32, i32
  }
  func.func @transform_1(%arg0: i32, %arg1: i32) -> (i32, i32, i32) {
    %c0_i32 = arith.constant 0 : i32
    %c0_i32_0 = arith.constant 0 : i32
    %c0_i32_1 = arith.constant 0 : i32
    %c0_i32_2 = arith.constant 0 : i32
    return %c0_i32, %c0_i32_0, %c0_i32_1 : i32, i32, i32
  }
  func.func @transform_2(%arg0: i32, %arg1: i32) -> (i32, i32) {
    %c0_i32 = arith.constant 0 : i32
    %c0_i32_0 = arith.constant 0 : i32
    %c0_i32_1 = arith.constant 0 : i32
    return %c0_i32, %c0_i32_0 : i32, i32
  }
  func.func @transform_3(%arg0: i32, %arg1: i32) -> (i32, i32, i32, i32) {
    %c0_i32 = arith.constant 0 : i32
    %c0_i32_0 = arith.constant 0 : i32
    %c0_i32_1 = arith.constant 0 : i32
    return %arg0, %arg1, %c0_i32, %c0_i32_0 : i32, i32, i32, i32
  }
}

</mosaic_0001>

<llo_original>
// kernel: tpu_custom_call.1
$region0: #{tpu_custom_call.1}
  #allocation0 [shape = 'u32[]', space=smem, size = 0x4, offset = 0x4, fixed_abs, tag = 'smem constant byte address 0x4 - core index']
  #allocation1 [shape = 'u32[144,128]{1,0:T(1,128)}', space=vmem, size = 0x12000, scoped, tag = 'internal scratch']
  %s0 = inlined_call_operand.vmem [shape: bf16[2,1,342,128], index: 0, kind: input, shape index: {}]
  %s1 = inlined_call_operand.vmem [shape: bf16[3,128,66], index: 1, kind: input, shape index: {}]
  %s2 = inlined_call_operand.vmem [shape: f32[1,22], index: 2, kind: input, shape index: {}]
  %s3 = inlined_call_operand.vmem [shape: f32[2,1,288,22], index: 3, kind: output, shape index: {}]
  %s4 = sld [smem:[#allocation0]]
  $region45: #{tpu_custom_call.1} parent=0
    _
  %s6 = ssub.s32 1, %s4
  %s7 = scalar_select 0, %s6, %s4
  loop: start=0, step=1, limit=4
  $region2: #{tpu_custom_call.1} parent=0 // loop_pre_header
    _
  $region3: #{tpu_custom_call.1} parent=0 // loop_header
    %s9 = sphi 0, %s13
    %p10 = scmp.ge.s32.totalorder %s9, 4
    %s16 = sphi 0, %s28
    %s17 = sphi 0, %s24
    %s18 = sphi 0, %s16
    %s19 = sphi 0, %s17
    %s20 = sphi 0, %s18
    %s21 = sphi 0, %s19
    %s33 = sphi 0, %s35
    %s36 = sphi 0, %s33
    %s37 = sphi 0, %s36
    %s53 = sphi 0, %s37
    %s57 = sphi 0, %s57
    %s59 = sphi 0, %s57
    %s60 = sphi 0, %s59
    %s74 = sphi 0, %s60
    %s78 = sphi 0, %s78
    %s80 = sphi 0, %s78
    %s81 = sphi 0, %s80
    %s95 = sphi 0, %s81
    %s103 = sphi 0, %s105
    %s106 = sphi 0, %s103
    %s107 = sphi 0, %s106
    %s123 = sphi 0, %s107
  $region4: #{tpu_custom_call.1} parent=0 // loop_header_branch
    %12 = sbr.rel (%p10) target = $region8
  $region5: #{tpu_custom_call.1} parent=0 // loop_body
    %s14 = ssub.s32 %s9, 1
    %s15 = ssub.s32 %s9, 2
    %s22 = sadd.s32 1, %s17
    %p23 = scmp.ge.s32.totalorder %s22, 1
    %s24 = scalar_select %p23, 0, %s22
    %s25 = sadd.s32 1, %s16
    %s26 = scalar_select %p23, %s25, %s16
    %p27 = scmp.ge.s32.totalorder %s26, 2
    %s28 = scalar_select %p27, 0, %s26
    %s29 = ssub.s32 %s16, %s28
    %s30 = ssub.s32 %s17, %s24
    %s31 = sor.u32 %s29, %s30
    %p32 = scmp.eq.s32.totalorder %s31, 0
    %s34 = sadd.s32 %s33, 1
    %s35 = scalar_select %p32, %s33, %s34
    %p38 = pneg %p32
    %p39 = scmp.eq.s32.totalorder %s9, 1
    %p40 = por %p38, %p39
    %p41 = scmp.ne.s32.totalorder %s33, %s36
    %p42 = scmp.eq.s32.totalorder %s9, 0
    %p43 = por %p41, %p42
    %p44 = scmp.ne.s32.totalorder %s33, %s36
    %p45 = scmp.eq.s32.totalorder %s14, 1
    %p46 = por %p44, %p45
    %p47 = scmp.ne.s32.totalorder %s36, %s37
    %p48 = scmp.eq.s32.totalorder %s14, 0
    %p49 = por %p47, %p48
    %p50 = scmp.ne.s32.totalorder %s36, %s37
    %p51 = scmp.eq.s32.totalorder %s15, 1
    %p52 = por %p50, %p51
    %p54 = scmp.ne.s32.totalorder %s37, %s53
    %p55 = scmp.eq.s32.totalorder %s15, 0
    %p56 = por %p54, %p55
    %s58 = sadd.s32 %s57, 1
    %p61 = scmp.eq.s32.totalorder %s9, 1
    %p62 = scmp.ne.s32.totalorder %s57, %s59
    %p63 = scmp.eq.s32.totalorder %s9, 0
    %p64 = por %p62, %p63
    %p65 = scmp.ne.s32.totalorder %s57, %s59
    %p66 = scmp.eq.s32.totalorder %s14, 1
    %p67 = por %p65, %p66
    %p68 = scmp.ne.s32.totalorder %s59, %s60
    %p69 = scmp.eq.s32.totalorder %s14, 0
    %p70 = por %p68, %p69
    %p71 = scmp.ne.s32.totalorder %s59, %s60
    %p72 = scmp.eq.s32.totalorder %s15, 1
    %p73 = por %p71, %p72
    %p75 = scmp.ne.s32.totalorder %s60, %s74
    %p76 = scmp.eq.s32.totalorder %s15, 0
    %p77 = por %p75, %p76
    %s79 = sadd.s32 %s78, 1
    %p82 = scmp.eq.s32.totalorder %s9, 1
    %p83 = scmp.ne.s32.totalorder %s78, %s80
    %p84 = scmp.eq.s32.totalorder %s9, 0
    %p85 = por %p83, %p84
    %p86 = scmp.ne.s32.totalorder %s78, %s80
    %p87 = scmp.eq.s32.totalorder %s14, 1
    %p88 = por %p86, %p87
    %p89 = scmp.ne.s32.totalorder %s80, %s81
    %p90 = scmp.eq.s32.totalorder %s14, 0
    %p91 = por %p89, %p90
    %p92 = scmp.ne.s32.totalorder %s80, %s81
    %p93 = scmp.eq.s32.totalorder %s15, 1
    %p94 = por %p92, %p93
    %p96 = scmp.ne.s32.totalorder %s81, %s95
    %p97 = scmp.eq.s32.totalorder %s15, 0
    %p98 = por %p96, %p97
    %s99 = ssub.s32 %s16, %s28
    %s100 = ssub.s32 %s17, %s24
    %s101 = sor.u32 %s99, %s100
    %p102 = scmp.eq.s32.totalorder %s101, 0
    %s104 = sadd.s32 %s103, 1
    %s105 = scalar_select %p102, %s103, %s104
    %p108 = pneg %p102
    %p109 = scmp.eq.s32.totalorder %s9, 1
    %p110 = por %p108, %p109
    %p111 = scmp.ne.s32.totalorder %s103, %s106
    %p112 = scmp.eq.s32.totalorder %s9, 0
    %p113 = por %p111, %p112
    %p114 = scmp.ne.s32.totalorder %s103, %s106
    %p115 = scmp.eq.s32.totalorder %s14, 1
    %p116 = por %p114, %p115
    %p117 = scmp.ne.s32.totalorder %s106, %s107
    %p118 = scmp.eq.s32.totalorder %s14, 0
    %p119 = por %p117, %p118
    %p120 = scmp.ne.s32.totalorder %s106, %s107
    %p121 = scmp.eq.s32.totalorder %s15, 1
    %p122 = por %p120, %p121
    %p124 = scmp.ne.s32.totalorder %s107, %s123
    %p125 = scmp.eq.s32.totalorder %s15, 0
    %p126 = por %p124, %p125
    %p127 = scmp.le.s32.totalorder 1, %s9
    %p128 = scmp.lt.s32.totalorder %s9, 3
    %p129 = pnand %p127, %p128
    %p130 = pneg %p129
    // Predicated region
    $region9: #{tpu_custom_call.1} parent=5 // pred_check
      _
    $region10: #{tpu_custom_call.1} parent=5 // pred_check_branch
      %132 = sbr.rel (%p129) target = $region12
    $region11: #{tpu_custom_call.1} parent=5 // pred_region
      %s133 = ssub.s32 %s9, 1
      // Predicated region
      $region13: #{tpu_custom_call.1} parent=11 // pred_check
        %p134 = pneg %p70
      $region14: #{tpu_custom_call.1} parent=11 // pred_check_branch
        %136 = sbr.rel (%p134) target = $region16
      $region15: #{tpu_custom_call.1} parent=11 // pred_region
        _
      $region16: #{tpu_custom_call.1} parent=11 // pred_fallthru
        _
      // Predicated region
      $region17: #{tpu_custom_call.1} parent=11 // pred_check
        %p137 = pneg %p91
      $region18: #{tpu_custom_call.1} parent=11 // pred_check_branch
        %139 = sbr.rel (%p137) target = $region20
      $region19: #{tpu_custom_call.1} parent=11 // pred_region
        _
      $region20: #{tpu_custom_call.1} parent=11 // pred_fallthru
        _
    $region12: #{tpu_custom_call.1} parent=5 // pred_fallthru
      _
    %p140 = scmp.lt.s32.totalorder %s9, 2
    // Predicated region
    $region21: #{tpu_custom_call.1} parent=5 // pred_check
      %p141 = pneg %p140
    $region22: #{tpu_custom_call.1} parent=5 // pred_check_branch
      %143 = sbr.rel (%p141) target = $region24
    $region23: #{tpu_custom_call.1} parent=5 // pred_region
      // Predicated region
      $region25: #{tpu_custom_call.1} parent=23 // pred_check
        %p144 = pneg %p43
      $region26: #{tpu_custom_call.1} parent=23 // pred_check_branch
        %146 = sbr.rel (%p144) target = $region28
      $region27: #{tpu_custom_call.1} parent=23 // pred_region
        %p147 = scmp.lt.s32.totalorder %s16, 1
        %s148 = scalar_select %p147, %s16, 1
        %p149 = scmp.lt.s32.totalorder %s17, 0
        %s150 = scalar_select %p149, %s17, 0
        %s151 = smul.addr %s150, 43
        %s152 = smul.addr %s148, 43
        %s153 = sadd.s32 %s151, %s152
        %s154 = smul.addr %s153, 4
        %s155 = scalar_lea.vmem %s0, %s154
      $region28: #{tpu_custom_call.1} parent=23 // pred_fallthru
        _
    $region24: #{tpu_custom_call.1} parent=5 // pred_fallthru
      _
    %p156 = scmp.le.s32.totalorder 1, %s9
    %p157 = scmp.lt.s32.totalorder %s9, 3
    %p158 = pnand %p156, %p157
    %p159 = pneg %p158
    // Predicated region
    $region29: #{tpu_custom_call.1} parent=5 // pred_check
      _
    $region30: #{tpu_custom_call.1} parent=5 // pred_check_branch
      %161 = sbr.rel (%p158) target = $region32
    $region31: #{tpu_custom_call.1} parent=5 // pred_region
      %s162 = ssub.s32 %s9, 1
      %p163 = scmp.lt.s32.totalorder %s18, 1
      %s164 = scalar_select %p163, %s18, 1
      %p165 = scmp.lt.s32.totalorder %s19, 0
      %s166 = scalar_select %p165, %s19, 0
      %s167 = smul.addr %s166, 43
      %s168 = smul.addr %s164, 43
      %s169 = sadd.s32 %s167, %s168
      %s170 = smul.addr %s169, 4
      %s171 = scalar_lea.vmem %s0, %s170
      %p172 = pneg %p49
      %p173 = pneg %p46
      %p174 = pneg %p70
      %p175 = pneg %p67
      %p176 = pneg %p91
      %p177 = pneg %p88
      %p178 = pneg %p119
      %p179 = pneg %p116
      %p180 = scmp.lt.s32.totalorder %s18, 1
      %s181 = scalar_select %p180, %s18, 1
      %p182 = scmp.lt.s32.totalorder %s19, 0
      %s183 = scalar_select %p182, %s19, 0
      %s184 = smul.addr %s183, 36
      %s185 = smul.addr %s181, 36
      %s186 = sadd.s32 %s184, %s185
      %s187 = smul.addr %s186, 8
      %s188 = scalar_lea.vmem %s3, %s187
      %p189 = scmp.lt.s32.totalorder %s18, 1
      %s190 = scalar_select %p189, %s18, 1
      %p191 = scmp.lt.s32.totalorder %s19, 0
      %s192 = scalar_select %p191, %s19, 0
      %s193 = smul.addr %s192, 43
      %s194 = smul.addr %s190, 43
      %s195 = sadd.s32 %s193, %s194
      %s196 = smul.addr %s195, 4
      %s197 = scalar_lea.vmem %s0, %s196
      %p198 = scmp.lt.s32.totalorder %s18, 1
      %s199 = scalar_select %p198, %s18, 1
      %p200 = scmp.lt.s32.totalorder %s19, 0
      %s201 = scalar_select %p200, %s19, 0
      %s202 = smul.addr %s201, 36
      %s203 = smul.addr %s199, 36
      %s204 = sadd.s32 %s202, %s203
      %s205 = smul.addr %s204, 8
      %s206 = scalar_lea.vmem %s3, %s205
      %v208 = vld [vmem:[%s2] sm:$0x1]
      %v210 = vlaneseq
      %v211 = vshrl.u32 %v210, 7
      %v212 = vsub.s32 0, %v211
      %v213 = vrot.slane %v208, %v212
      %vm215 = vcmask 179200
      %216 = vst.msk [vmem:[%s206] sm:$0xff] %vm215, %v213
      %217 = vst.msk [vmem:[%s206 + $0x8] sm:$0xff] %vm215, %v213
      %218 = vst.msk [vmem:[%s206 + $0x10] sm:$0xff] %vm215, %v213
      %219 = vst.msk [vmem:[%s206 + $0x18] sm:$0xff] %vm215, %v213
      %220 = vst.msk [vmem:[%s206 + $0x20] sm:$0xff] %vm215, %v213
      %221 = vst.msk [vmem:[%s206 + $0x28] sm:$0xff] %vm215, %v213
      %222 = vst.msk [vmem:[%s206 + $0x30] sm:$0xff] %vm215, %v213
      %223 = vst.msk [vmem:[%s206 + $0x38] sm:$0xff] %vm215, %v213
      %224 = vst.msk [vmem:[%s206 + $0x40] sm:$0xff] %vm215, %v213
      %225 = vst.msk [vmem:[%s206 + $0x48] sm:$0xff] %vm215, %v213
      %226 = vst.msk [vmem:[%s206 + $0x50] sm:$0xff] %vm215, %v213
      %227 = vst.msk [vmem:[%s206 + $0x58] sm:$0xff] %vm215, %v213
      %228 = vst.msk [vmem:[%s206 + $0x60] sm:$0xff] %vm215, %v213
      %229 = vst.msk [vmem:[%s206 + $0x68] sm:$0xff] %vm215, %v213
      %230 = vst.msk [vmem:[%s206 + $0x70] sm:$0xff] %vm215, %v213
      %231 = vst.msk [vmem:[%s206 + $0x78] sm:$0xff] %vm215, %v213
      %232 = vst.msk [vmem:[%s206 + $0x80] sm:$0xff] %vm215, %v213
      %233 = vst.msk [vmem:[%s206 + $0x88] sm:$0xff] %vm215, %v213
      %234 = vst.msk [vmem:[%s206 + $0x90] sm:$0xff] %vm215, %v213
      %235 = vst.msk [vmem:[%s206 + $0x98] sm:$0xff] %vm215, %v213
      %236 = vst.msk [vmem:[%s206 + $0xa0] sm:$0xff] %vm215, %v213
      %237 = vst.msk [vmem:[%s206 + $0xa8] sm:$0xff] %vm215, %v213
      %238 = vst.msk [vmem:[%s206 + $0xb0] sm:$0xff] %vm215, %v213
      %239 = vst.msk [vmem:[%s206 + $0xb8] sm:$0xff] %vm215, %v213
      %240 = vst.msk [vmem:[%s206 + $0xc0] sm:$0xff] %vm215, %v213
      %241 = vst.msk [vmem:[%s206 + $0xc8] sm:$0xff] %vm215, %v213
      %242 = vst.msk [vmem:[%s206 + $0xd0] sm:$0xff] %vm215, %v213
      %243 = vst.msk [vmem:[%s206 + $0xd8] sm:$0xff] %vm215, %v213
      %244 = vst.msk [vmem:[%s206 + $0xe0] sm:$0xff] %vm215, %v213
      %245 = vst.msk [vmem:[%s206 + $0xe8] sm:$0xff] %vm215, %v213
      %246 = vst.msk [vmem:[%s206 + $0xf0] sm:$0xff] %vm215, %v213
      %247 = vst.msk [vmem:[%s206 + $0xf8] sm:$0xff] %vm215, %v213
      %248 = vst.msk [vmem:[%s206 + $0x100] sm:$0xff] %vm215, %v213
      %249 = vst.msk [vmem:[%s206 + $0x108] sm:$0xff] %vm215, %v213
      %250 = vst.msk [vmem:[%s206 + $0x110] sm:$0xff] %vm215, %v213
      %251 = vst.msk [vmem:[%s206 + $0x118] sm:$0xff] %vm215, %v213
      %v252 = vld [vmem:[%s197] sm:$0xf]
      %v253 = vld [vmem:[%s197 + $0x4] sm:$0xf]
      %v254 = vld [vmem:[%s197 + $0x8] sm:$0xf]
      %v255 = vld [vmem:[%s197 + $0xc] sm:$0xf]
      %v256 = vld [vmem:[%s197 + $0x10] sm:$0xf]
      %v257 = vld [vmem:[%s197 + $0x14] sm:$0xf]
      %v258 = vld [vmem:[%s197 + $0x18] sm:$0xf]
      %v259 = vld [vmem:[%s197 + $0x1c] sm:$0xf]
      %v260 = vld [vmem:[%s197 + $0x20] sm:$0xf]
      %v261 = vld [vmem:[%s197 + $0x24] sm:$0xf]
      %v262 = vld [vmem:[%s197 + $0x28] sm:$0xf]
      %v263 = vld [vmem:[%s197 + $0x2c] sm:$0xf]
      %v264 = vld [vmem:[%s197 + $0x30] sm:$0xf]
      %v265 = vld [vmem:[%s197 + $0x34] sm:$0xf]
      %v266 = vld [vmem:[%s197 + $0x38] sm:$0xf]
      %v267 = vld [vmem:[%s197 + $0x3c] sm:$0xf]
      %v268 = vld [vmem:[%s197 + $0x40] sm:$0xf]
      %v269 = vld [vmem:[%s197 + $0x44] sm:$0xf]
      %v270 = vld [vmem:[%s197 + $0x48] sm:$0xf]
      %v271 = vld [vmem:[%s197 + $0x4c] sm:$0xf]
      %v272 = vld [vmem:[%s197 + $0x50] sm:$0xf]
      %v273 = vld [vmem:[%s197 + $0x54] sm:$0xf]
      %v274 = vld [vmem:[%s197 + $0x58] sm:$0xf]
      %v275 = vld [vmem:[%s197 + $0x5c] sm:$0xf]
      %v276 = vld [vmem:[%s197 + $0x60] sm:$0xf]
      %v277 = vld [vmem:[%s197 + $0x64] sm:$0xf]
      %v278 = vld [vmem:[%s197 + $0x68] sm:$0xf]
      %v279 = vld [vmem:[%s197 + $0x6c] sm:$0xf]
      %v280 = vld [vmem:[%s197 + $0x70] sm:$0xf]
      %v281 = vld [vmem:[%s197 + $0x74] sm:$0xf]
      %v282 = vld [vmem:[%s197 + $0x78] sm:$0xf]
      %v283 = vld [vmem:[%s197 + $0x7c] sm:$0xf]
      %v284 = vld [vmem:[%s197 + $0x80] sm:$0xf]
      %v285 = vld [vmem:[%s197 + $0x84] sm:$0xf]
      %v286 = vld [vmem:[%s197 + $0x88] sm:$0xf]
      %v287 = vld [vmem:[%s197 + $0x8c] sm:$0xf]
      %v288 = vld [vmem:[%s197 + $0x90] sm:$0xf]
      %v289 = vld [vmem:[%s197 + $0x94] sm:$0xf]
      %v290 = vld [vmem:[%s197 + $0x98] sm:$0x1]
      %v291 = vld [vmem:[%s1] sm:$0xf]
      %v292 = vld [vmem:[%s1 + $0x4] sm:$0xf]
      %v293 = vld [vmem:[%s1 + $0x8] sm:$0xf]
      %v294 = vld [vmem:[%s1 + $0xc] sm:$0xf]
      %v295 = vld [vmem:[%s1 + $0x10] sm:$0xf]
      %v296 = vld [vmem:[%s1 + $0x14] sm:$0xf]
      %v297 = vld [vmem:[%s1 + $0x18] sm:$0xf]
      %v298 = vld [vmem:[%s1 + $0x1c] sm:$0xf]
      %v299 = vld [vmem:[%s1 + $0x20] sm:$0xf]
      %v300 = vld [vmem:[%s1 + $0x24] sm:$0xf]
      %v301 = vld [vmem:[%s1 + $0x28] sm:$0xf]
      %v302 = vld [vmem:[%s1 + $0x2c] sm:$0xf]
      %v303 = vld [vmem:[%s1 + $0x30] sm:$0xf]
      %v304 = vld [vmem:[%s1 + $0x34] sm:$0xf]
      %v305 = vld [vmem:[%s1 + $0x38] sm:$0xf]
      %v306 = vld [vmem:[%s1 + $0x3c] sm:$0xf]
      %v346 = vunpack.c.l.b16 %v252
      %v347 = vunpack.c.l.b16 %v253
      %v348 = vunpack.c.l.b16 %v254
      %v349 = vunpack.c.l.b16 %v255
      %v350 = vunpack.c.l.b16 %v256
      %v351 = vunpack.c.l.b16 %v257
      %v352 = vunpack.c.l.b16 %v258
      %v353 = vunpack.c.l.b16 %v259
      %v354 = vunpack.c.l.b16 %v260
      %v355 = vunpack.c.l.b16 %v261
      %v356 = vunpack.c.l.b16 %v262
      %v357 = vunpack.c.l.b16 %v263
      %v358 = vunpack.c.l.b16 %v264
      %v359 = vunpack.c.l.b16 %v265
      %v360 = vunpack.c.l.b16 %v266
      %v361 = vunpack.c.l.b16 %v267
      %v362 = vunpack.c.l.b16 %v268
      %v363 = vunpack.c.l.b16 %v269
      %v364 = vunpack.c.l.b16 %v270
      %v365 = vunpack.c.l.b16 %v271
      %v366 = vunpack.c.l.b16 %v272
      %v367 = vunpack.c.l.b16 %v273
      %v368 = vunpack.c.l.b16 %v274
      %v369 = vunpack.c.l.b16 %v275
      %v370 = vunpack.c.l.b16 %v276
      %v371 = vunpack.c.l.b16 %v277
      %v372 = vunpack.c.l.b16 %v278
      %v373 = vunpack.c.l.b16 %v279
      %v374 = vunpack.c.l.b16 %v280
      %v375 = vunpack.c.l.b16 %v281
      %v376 = vunpack.c.l.b16 %v282
      %v377 = vunpack.c.l.b16 %v283
      %v378 = vunpack.c.l.b16 %v284
      %v379 = vunpack.c.l.b16 %v285
      %v380 = vunpack.c.l.b16 %v286
      %v381 = vunpack.c.l.b16 %v287
      %v382 = vunpack.c.l.b16 %v288
      %v383 = vunpack.c.l.b16 %v289
      %v384 = vunpack.c.l.b16 %v290
      %v385 = vpack.c.b16 %v347, %v346
      %v386 = vpack.c.b16 %v349, %v348
      %v387 = vpack.c.b16 %v351, %v350
      %v388 = vpack.c.b16 %v353, %v352
      %v389 = vpack.c.b16 %v355, %v354
      %v390 = vpack.c.b16 %v357, %v356
      %v391 = vpack.c.b16 %v359, %v358
      %v392 = vpack.c.b16 %v361, %v360
      %v393 = vpack.c.b16 %v363, %v362
      %v394 = vpack.c.b16 %v365, %v364
      %v395 = vpack.c.b16 %v367, %v366
      %v396 = vpack.c.b16 %v369, %v368
      %v397 = vpack.c.b16 %v371, %v370
      %v398 = vpack.c.b16 %v373, %v372
      %v399 = vpack.c.b16 %v375, %v374
      %v400 = vpack.c.b16 %v377, %v376
      %v401 = vpack.c.b16 %v379, %v378
      %v402 = vpack.c.b16 %v381, %v380
      %v403 = vpack.c.b16 %v383, %v382
      %v404 = vpack.c.b16 %v384, %v384
      %v441 = vunpack.c.l.b16 %v291
      %v442 = vunpack.c.l.b16 %v292
      %v443 = vunpack.c.l.b16 %v293
      %v444 = vunpack.c.l.b16 %v294
      %v445 = vunpack.c.l.b16 %v295
      %v446 = vunpack.c.l.b16 %v296
      %v447 = vunpack.c.l.b16 %v297
      %v448 = vunpack.c.l.b16 %v298
      %v449 = vunpack.c.l.b16 %v299
      %v450 = vunpack.c.l.b16 %v300
      %v451 = vunpack.c.l.b16 %v301
      %v452 = vunpack.c.l.b16 %v302
      %v453 = vunpack.c.l.b16 %v303
      %v454 = vunpack.c.l.b16 %v304
      %v455 = vunpack.c.l.b16 %v305
      %v456 = vunpack.c.l.b16 %v306
      %v457 = vpack.c.b16 %v442, %v441
      %v458 = vpack.c.b16 %v444, %v443
      %v459 = vpack.c.b16 %v446, %v445
      %v460 = vpack.c.b16 %v448, %v447
      %v461 = vpack.c.b16 %v450, %v449
      %v462 = vpack.c.b16 %v452, %v451
      %v463 = vpack.c.b16 %v454, %v453
      %v464 = vpack.c.b16 %v456, %v455
      %473 = vmatprep.subr.bf16.mxu0 0
      %474 = vmatpush1.bf16.msra.mxu0 %v457
      %475 = vmatprep.subr.bf16.mxu0 0
      %476 = vmatpush1.bf16.msra.mxu0 %v458
      %477 = vmatprep.subr.bf16.mxu0 0
      %478 = vmatpush1.bf16.msra.mxu0 %v459
      %479 = vmatprep.subr.bf16.mxu0 0
      %480 = vmatpush1.bf16.msra.mxu0 %v460
      %481 = vmatprep.subr.bf16.mxu0 0
      %482 = vmatpush1.bf16.msra.mxu0 %v461
      %483 = vmatprep.subr.bf16.mxu0 0
      %484 = vmatpush1.bf16.msra.mxu0 %v462
      %485 = vmatprep.subr.bf16.mxu0 0
      %486 = vmatpush1.bf16.msra.mxu0 %v463
      %487 = vmatprep.subr.bf16.mxu0 0
      %488 = vmatpush1.bf16.msra.mxu0 %v464
      %489 = vmatprep.subr.bf16.mxu0 0
      %490 = vmatpush1.bf16.msra.mxu0 0
      %491 = vmatprep.subr.bf16.mxu0 0
      %492 = vmatpush1.bf16.msra.mxu0 0
      %493 = vmatprep.subr.bf16.mxu0 0
      %494 = vmatpush1.bf16.msra.mxu0 0
      %495 = vmatprep.subr.bf16.mxu0 0
      %496 = vmatpush1.bf16.msra.mxu0 0
      %497 = vmatprep.subr.bf16.mxu0 0
      %498 = vmatpush1.bf16.msra.mxu0 0
      %499 = vmatprep.subr.bf16.mxu0 0
      %500 = vmatpush1.bf16.msra.mxu0 0
      %501 = vmatprep.subr.bf16.mxu0 0
      %502 = vmatpush1.bf16.msra.mxu0 0
      %503 = vmatprep.subr.bf16.mxu0 0
      %504 = vmatpush1.bf16.msra.mxu0 0
      %505 = vmatprep.mubr.bf16.mxu0 0
      %506 = vmatmul.mubr.bf16.gmra.mrb[0].mxu0 %v385
      %v507 = vpop.f32.mrb[0].mxu0
      %v508 = vadd.f32 0.0, %v507
      %v509 = vpop.f32.mrb[0].mxu0
      %v510 = vpop.f32.mrb[0].mxu0
      %v511 = vadd.f32 0.0, %v510
      %v512 = vpop.f32.mrb[0].mxu0
      %513 = vmatprep.mubr.bf16.mxu0 0
      %514 = vmatmul.mubr.bf16.gmra.mrb[0].mxu0 %v386
      %v515 = vpop.f32.mrb[0].mxu0
      %v516 = vadd.f32 0.0, %v515
      %v517 = vpop.f32.mrb[0].mxu0
      %v518 = vpop.f32.mrb[0].mxu0
      %v519 = vadd.f32 0.0, %v518
      %v520 = vpop.f32.mrb[0].mxu0
      %521 = vmatprep.mubr.bf16.mxu0 0
      %522 = vmatmul.mubr.bf16.gmra.mrb[0].mxu0 %v387
      %v523 = vpop.f32.mrb[0].mxu0
      %v524 = vadd.f32 0.0, %v523
      %v525 = vpop.f32.mrb[0].mxu0
      %v526 = vpop.f32.mrb[0].mxu0
      %v527 = vadd.f32 0.0, %v526
      %v528 = vpop.f32.mrb[0].mxu0
      %529 = vmatprep.mubr.bf16.mxu0 0
      %530 = vmatmul.mubr.bf16.gmra.mrb[0].mxu0 %v388
      %v531 = vpop.f32.mrb[0].mxu0
      %v532 = vadd.f32 0.0, %v531
      %v533 = vpop.f32.mrb[0].mxu0
      %v534 = vpop.f32.mrb[0].mxu0
      %v535 = vadd.f32 0.0, %v534
      %v536 = vpop.f32.mrb[0].mxu0
      %537 = vmatprep.mubr.bf16.mxu0 0
      %538 = vmatmul.mubr.bf16.gmra.mrb[0].mxu0 %v389
      %v539 = vpop.f32.mrb[0].mxu0
      %v540 = vadd.f32 0.0, %v539
      %v541 = vpop.f32.mrb[0].mxu0
      %v542 = vpop.f32.mrb[0].mxu0
      %v543 = vadd.f32 0.0, %v542
      %v544 = vpop.f32.mrb[0].mxu0
      %545 = vmatprep.mubr.bf16.mxu0 0
      %546 = vmatmul.mubr.bf16.gmra.mrb[0].mxu0 %v390
      %v547 = vpop.f32.mrb[0].mxu0
      %v548 = vadd.f32 0.0, %v547
      %v549 = vpop.f32.mrb[0].mxu0
      %v550 = vpop.f32.mrb[0].mxu0
      %v551 = vadd.f32 0.0, %v550
      %v552 = vpop.f32.mrb[0].mxu0
      %553 = vmatprep.mubr.bf16.mxu0 0
      %554 = vmatmul.mubr.bf16.gmra.mrb[0].mxu0 %v391
      %v555 = vpop.f32.mrb[0].mxu0
      %v556 = vadd.f32 0.0, %v555
      %v557 = vpop.f32.mrb[0].mxu0
      %v558 = vpop.f32.mrb[0].mxu0
      %v559 = vadd.f32 0.0, %v558
      %v560 = vpop.f32.mrb[0].mxu0
      %561 = vmatprep.mubr.bf16.mxu0 0
      %562 = vmatmul.mubr.bf16.gmra.mrb[0].mxu0 %v392
      %v563 = vpop.f32.mrb[0].mxu0
      %v564 = vadd.f32 0.0, %v563
      %v565 = vpop.f32.mrb[0].mxu0
      %v566 = vpop.f32.mrb[0].mxu0
      %v567 = vadd.f32 0.0, %v566
      %v568 = vpop.f32.mrb[0].mxu0
      %569 = vmatprep.mubr.bf16.mxu0 0
      %570 = vmatmul.mubr.bf16.gmra.mrb[0].mxu0 %v393
      %v571 = vpop.f32.mrb[0].mxu0
      %v572 = vadd.f32 0.0, %v571
      %v573 = vpop.f32.mrb[0].mxu0
      %v574 = vpop.f32.mrb[0].mxu0
      %v575 = vadd.f32 0.0, %v574
      %v576 = vpop.f32.mrb[0].mxu0
      %577 = vmatprep.mubr.bf16.mxu0 0
      %578 = vmatmul.mubr.bf16.gmra.mrb[0].mxu0 %v394
      %v579 = vpop.f32.mrb[0].mxu0
      %v580 = vadd.f32 0.0, %v579
      %v581 = vpop.f32.mrb[0].mxu0
      %v582 = vpop.f32.mrb[0].mxu0
      %v583 = vadd.f32 0.0, %v582
      %v584 = vpop.f32.mrb[0].mxu0
      %585 = vmatprep.mubr.bf16.mxu0 0
      %586 = vmatmul.mubr.bf16.gmra.mrb[0].mxu0 %v395
      %v587 = vpop.f32.mrb[0].mxu0
      %v588 = vadd.f32 0.0, %v587
      %v589 = vpop.f32.mrb[0].mxu0
      %v590 = vpop.f32.mrb[0].mxu0
      %v591 = vadd.f32 0.0, %v590
      %v592 = vpop.f32.mrb[0].mxu0
      %593 = vmatprep.mubr.bf16.mxu0 0
      %594 = vmatmul.mubr.bf16.gmra.mrb[0].mxu0 %v396
      %v595 = vpop.f32.mrb[0].mxu0
      %v596 = vadd.f32 0.0, %v595
      %v597 = vpop.f32.mrb[0].mxu0
      %v598 = vpop.f32.mrb[0].mxu0
      %v599 = vadd.f32 0.0, %v598
      %v600 = vpop.f32.mrb[0].mxu0
      %601 = vmatprep.mubr.bf16.mxu0 0
      %602 = vmatmul.mubr.bf16.gmra.mrb[0].mxu0 %v397
      %v603 = vpop.f32.mrb[0].mxu0
      %v604 = vadd.f32 0.0, %v603
      %v605 = vpop.f32.mrb[0].mxu0
      %v606 = vpop.f32.mrb[0].mxu0
      %v607 = vadd.f32 0.0, %v606
      %v608 = vpop.f32.mrb[0].mxu0
      %609 = vmatprep.mubr.bf16.mxu0 0
      %610 = vmatmul.mubr.bf16.gmra.mrb[0].mxu0 %v398
      %v611 = vpop.f32.mrb[0].mxu0
      %v612 = vadd.f32 0.0, %v611
      %v613 = vpop.f32.mrb[0].mxu0
      %v614 = vpop.f32.mrb[0].mxu0
      %v615 = vadd.f32 0.0, %v614
      %v616 = vpop.f32.mrb[0].mxu0
      %617 = vmatprep.mubr.bf16.mxu0 0
      %618 = vmatmul.mubr.bf16.gmra.mrb[0].mxu0 %v399
      %v619 = vpop.f32.mrb[0].mxu0
      %v620 = vadd.f32 0.0, %v619
      %v621 = vpop.f32.mrb[0].mxu0
      %v622 = vpop.f32.mrb[0].mxu0
      %v623 = vadd.f32 0.0, %v622
      %v624 = vpop.f32.mrb[0].mxu0
      %625 = vmatprep.mubr.bf16.mxu0 0
      %626 = vmatmul.mubr.bf16.gmra.mrb[0].mxu0 %v400
      %v627 = vpop.f32.mrb[0].mxu0
      %v628 = vadd.f32 0.0, %v627
      %v629 = vpop.f32.mrb[0].mxu0
      %v630 = vpop.f32.mrb[0].mxu0
      %v631 = vadd.f32 0.0, %v630
      %v632 = vpop.f32.mrb[0].mxu0
      %633 = vmatprep.mubr.bf16.mxu0 0
      %634 = vmatmul.mubr.bf16.gmra.mrb[0].mxu0 %v401
      %v635 = vpop.f32.mrb[0].mxu0
      %v636 = vadd.f32 0.0, %v635
      %v637 = vpop.f32.mrb[0].mxu0
      %v638 = vpop.f32.mrb[0].mxu0
      %v639 = vadd.f32 0.0, %v638
      %v640 = vpop.f32.mrb[0].mxu0
      %641 = vmatprep.mubr.bf16.mxu0 0
      %642 = vmatmul.mubr.bf16.gmra.mrb[0].mxu0 %v402
      %v643 = vpop.f32.mrb[0].mxu0
      %v644 = vadd.f32 0.0, %v643
      %v645 = vpop.f32.mrb[0].mxu0
      %v646 = vpop.f32.mrb[0].mxu0
      %v647 = vadd.f32 0.0, %v646
      %v648 = vpop.f32.mrb[0].mxu0
      %649 = vmatprep.mubr.bf16.mxu0 0
      %650 = vmatmul.mubr.bf16.gmra.mrb[0].mxu0 %v403
      %v651 = vpop.f32.mrb[0].mxu0
      %v652 = vadd.f32 0.0, %v651
      %v653 = vpop.f32.mrb[0].mxu0
      %v654 = vpop.f32.mrb[0].mxu0
      %v655 = vpop.f32.mrb[0].mxu0
      %656 = vmatprep.mubr.bf16.mxu0 0
      %657 = vmatmul.mubr.bf16.gmra.mrb[0].mxu0 %v404
      %v658 = vpop.f32.mrb[0].mxu0
      %v659 = vpop.f32.mrb[0].mxu0
      %v660 = vpop.f32.mrb[0].mxu0
      %v661 = vpop.f32.mrb[0].mxu0
      %662 = vdwg.mxu0
      %v663 = vld [vmem:[%s206] sm:$0xff]
      %v664 = vld [vmem:[%s206 + $0x8] sm:$0xff]
      %v665 = vld [vmem:[%s206 + $0x10] sm:$0xff]
      %v666 = vld [vmem:[%s206 + $0x18] sm:$0xff]
      %v667 = vld [vmem:[%s206 + $0x20] sm:$0xff]
      %v668 = vld [vmem:[%s206 + $0x28] sm:$0xff]
      %v669 = vld [vmem:[%s206 + $0x30] sm:$0xff]
      %v670 = vld [vmem:[%s206 + $0x38] sm:$0xff]
      %v671 = vld [vmem:[%s206 + $0x40] sm:$0xff]
      %v672 = vld [vmem:[%s206 + $0x48] sm:$0xff]
      %v673 = vld [vmem:[%s206 + $0x50] sm:$0xff]
      %v674 = vld [vmem:[%s206 + $0x58] sm:$0xff]
      %v675 = vld [vmem:[%s206 + $0x60] sm:$0xff]
      %v676 = vld [vmem:[%s206 + $0x68] sm:$0xff]
      %v677 = vld [vmem:[%s206 + $0x70] sm:$0xff]
      %v678 = vld [vmem:[%s206 + $0x78] sm:$0xff]
      %v679 = vld [vmem:[%s206 + $0x80] sm:$0xff]
      %v680 = vld [vmem:[%s206 + $0x88] sm:$0xff]
      %v681 = vld [vmem:[%s206 + $0x90] sm:$0xff]
      %v682 = vld [vmem:[%s206 + $0x98] sm:$0xff]
      %v683 = vld [vmem:[%s206 + $0xa0] sm:$0xff]
      %v684 = vld [vmem:[%s206 + $0xa8] sm:$0xff]
      %v685 = vld [vmem:[%s206 + $0xb0] sm:$0xff]
      %v686 = vld [vmem:[%s206 + $0xb8] sm:$0xff]
      %v687 = vld [vmem:[%s206 + $0xc0] sm:$0xff]
      %v688 = vld [vmem:[%s206 + $0xc8] sm:$0xff]
      %v689 = vld [vmem:[%s206 + $0xd0] sm:$0xff]
      %v690 = vld [vmem:[%s206 + $0xd8] sm:$0xff]
      %v691 = vld [vmem:[%s206 + $0xe0] sm:$0xff]
      %v692 = vld [vmem:[%s206 + $0xe8] sm:$0xff]
      %v693 = vld [vmem:[%s206 + $0xf0] sm:$0xff]
      %v694 = vld [vmem:[%s206 + $0xf8] sm:$0xff]
      %v695 = vld [vmem:[%s206 + $0x100] sm:$0xff]
      %v696 = vld [vmem:[%s206 + $0x108] sm:$0xff]
      %v697 = vld [vmem:[%s206 + $0x110] sm:$0xff]
      %v698 = vld [vmem:[%s206 + $0x118] sm:$0xff]
      %vm736 = vcmask 1046528
      %v737 = vrot.slane %v508, 1
      %v738 = vrot.slane %v511, 1
      %v739 = vsel %vm736, %v737, %v738
      %v740 = vrot.slane %v516, 1
      %v741 = vsel %vm736, %v738, %v740
      %v742 = vrot.slane %v519, 1
      %v743 = vsel %vm736, %v740, %v742
      %v744 = vrot.slane %v524, 1
      %v745 = vsel %vm736, %v742, %v744
      %v746 = vrot.slane %v527, 1
      %v747 = vsel %vm736, %v744, %v746
      %v748 = vrot.slane %v532, 1
      %v749 = vsel %vm736, %v746, %v748
      %v750 = vrot.slane %v535, 1
      %v751 = vsel %vm736, %v748, %v750
      %v752 = vrot.slane %v540, 1
      %v753 = vsel %vm736, %v750, %v752
      %v754 = vrot.slane %v543, 1
      %v755 = vsel %vm736, %v752, %v754
      %v756 = vrot.slane %v548, 1
      %v757 = vsel %vm736, %v754, %v756
      %v758 = vrot.slane %v551, 1
      %v759 = vsel %vm736, %v756, %v758
      %v760 = vrot.slane %v556, 1
      %v761 = vsel %vm736, %v758, %v760
      %v762 = vrot.slane %v559, 1
      %v763 = vsel %vm736, %v760, %v762
      %v764 = vrot.slane %v564, 1
      %v765 = vsel %vm736, %v762, %v764
      %v766 = vrot.slane %v567, 1
      %v767 = vsel %vm736, %v764, %v766
      %v768 = vrot.slane %v572, 1
      %v769 = vsel %vm736, %v766, %v768
      %v770 = vrot.slane %v575, 1
      %v771 = vsel %vm736, %v768, %v770
      %v772 = vrot.slane %v580, 1
      %v773 = vsel %vm736, %v770, %v772
      %v774 = vrot.slane %v583, 1
      %v775 = vsel %vm736, %v772, %v774
      %v776 = vrot.slane %v588, 1
      %v777 = vsel %vm736, %v774, %v776
      %v778 = vrot.slane %v591, 1
      %v779 = vsel %vm736, %v776, %v778
      %v780 = vrot.slane %v596, 1
      %v781 = vsel %vm736, %v778, %v780
      %v782 = vrot.slane %v599, 1
      %v783 = vsel %vm736, %v780, %v782
      %v784 = vrot.slane %v604, 1
      %v785 = vsel %vm736, %v782, %v784
      %v786 = vrot.slane %v607, 1
      %v787 = vsel %vm736, %v784, %v786
      %v788 = vrot.slane %v612, 1
      %v789 = vsel %vm736, %v786, %v788
      %v790 = vrot.slane %v615, 1
      %v791 = vsel %vm736, %v788, %v790
      %v792 = vrot.slane %v620, 1
      %v793 = vsel %vm736, %v790, %v792
      %v794 = vrot.slane %v623, 1
      %v795 = vsel %vm736, %v792, %v794
      %v796 = vrot.slane %v628, 1
      %v797 = vsel %vm736, %v794, %v796
      %v798 = vrot.slane %v631, 1
      %v799 = vsel %vm736, %v796, %v798
      %v800 = vrot.slane %v636, 1
      %v801 = vsel %vm736, %v798, %v800
      %v802 = vrot.slane %v639, 1
      %v803 = vsel %vm736, %v800, %v802
      %v804 = vrot.slane %v644, 1
      %v805 = vsel %vm736, %v802, %v804
      %v806 = vrot.slane %v647, 1
      %v807 = vsel %vm736, %v804, %v806
      %v808 = vrot.slane %v652, 1
      %v809 = vsel %vm736, %v806, %v808
      %810 = vrot.lane.b32.xlu0 %v739, 106
      %v811 = vpop.permute.xlu0 %810
      %812 = vrot.lane.b32.xlu0 %v741, 106
      %v813 = vpop.permute.xlu0 %812
      %814 = vrot.lane.b32.xlu0 %v743, 106
      %v815 = vpop.permute.xlu0 %814
      %816 = vrot.lane.b32.xlu0 %v745, 106
      %v817 = vpop.permute.xlu0 %816
      %818 = vrot.lane.b32.xlu0 %v747, 106
      %v819 = vpop.permute.xlu0 %818
      %820 = vrot.lane.b32.xlu0 %v749, 106
      %v821 = vpop.permute.xlu0 %820
      %822 = vrot.lane.b32.xlu0 %v751, 106
      %v823 = vpop.permute.xlu0 %822
      %824 = vrot.lane.b32.xlu0 %v753, 106
      %v825 = vpop.permute.xlu0 %824
      %826 = vrot.lane.b32.xlu0 %v755, 106
      %v827 = vpop.permute.xlu0 %826
      %828 = vrot.lane.b32.xlu0 %v757, 106
      %v829 = vpop.permute.xlu0 %828
      %830 = vrot.lane.b32.xlu0 %v759, 106
      %v831 = vpop.permute.xlu0 %830
      %832 = vrot.lane.b32.xlu0 %v761, 106
      %v833 = vpop.permute.xlu0 %832
      %834 = vrot.lane.b32.xlu0 %v763, 106
      %v835 = vpop.permute.xlu0 %834
      %836 = vrot.lane.b32.xlu0 %v765, 106
      %v837 = vpop.permute.xlu0 %836
      %838 = vrot.lane.b32.xlu0 %v767, 106
      %v839 = vpop.permute.xlu0 %838
      %840 = vrot.lane.b32.xlu0 %v769, 106
      %v841 = vpop.permute.xlu0 %840
      %842 = vrot.lane.b32.xlu0 %v771, 106
      %v843 = vpop.permute.xlu0 %842
      %844 = vrot.lane.b32.xlu0 %v773, 106
      %v845 = vpop.permute.xlu0 %844
      %846 = vrot.lane.b32.xlu0 %v775, 106
      %v847 = vpop.permute.xlu0 %846
      %848 = vrot.lane.b32.xlu0 %v777, 106
      %v849 = vpop.permute.xlu0 %848
      %850 = vrot.lane.b32.xlu0 %v779, 106
      %v851 = vpop.permute.xlu0 %850
      %852 = vrot.lane.b32.xlu0 %v781, 106
      %v853 = vpop.permute.xlu0 %852
      %854 = vrot.lane.b32.xlu0 %v783, 106
      %v855 = vpop.permute.xlu0 %854
      %856 = vrot.lane.b32.xlu0 %v785, 106
      %v857 = vpop.permute.xlu0 %856
      %858 = vrot.lane.b32.xlu0 %v787, 106
      %v859 = vpop.permute.xlu0 %858
      %860 = vrot.lane.b32.xlu0 %v789, 106
      %v861 = vpop.permute.xlu0 %860
      %862 = vrot.lane.b32.xlu0 %v791, 106
      %v863 = vpop.permute.xlu0 %862
      %864 = vrot.lane.b32.xlu0 %v793, 106
      %v865 = vpop.permute.xlu0 %864
      %866 = vrot.lane.b32.xlu0 %v795, 106
      %v867 = vpop.permute.xlu0 %866
      %868 = vrot.lane.b32.xlu0 %v797, 106
      %v869 = vpop.permute.xlu0 %868
      %870 = vrot.lane.b32.xlu0 %v799, 106
      %v871 = vpop.permute.xlu0 %870
      %872 = vrot.lane.b32.xlu0 %v801, 106
      %v873 = vpop.permute.xlu0 %872
      %874 = vrot.lane.b32.xlu0 %v803, 106
      %v875 = vpop.permute.xlu0 %874
      %876 = vrot.lane.b32.xlu0 %v805, 106
      %v877 = vpop.permute.xlu0 %876
      %878 = vrot.lane.b32.xlu0 %v807, 106
      %v879 = vpop.permute.xlu0 %878
      %880 = vrot.lane.b32.xlu0 %v809, 106
      %v881 = vpop.permute.xlu0 %880
      %v918 = vadd.f32 %v508, %v811
      %v919 = vadd.f32 %v511, %v813
      %v920 = vadd.f32 %v516, %v815
      %v921 = vadd.f32 %v519, %v817
      %v922 = vadd.f32 %v524, %v819
      %v923 = vadd.f32 %v527, %v821
      %v924 = vadd.f32 %v532, %v823
      %v925 = vadd.f32 %v535, %v825
      %v926 = vadd.f32 %v540, %v827
      %v927 = vadd.f32 %v543, %v829
      %v928 = vadd.f32 %v548, %v831
      %v929 = vadd.f32 %v551, %v833
      %v930 = vadd.f32 %v556, %v835
      %v931 = vadd.f32 %v559, %v837
      %v932 = vadd.f32 %v564, %v839
      %v933 = vadd.f32 %v567, %v841
      %v934 = vadd.f32 %v572, %v843
      %v935 = vadd.f32 %v575, %v845
      %v936 = vadd.f32 %v580, %v847
      %v937 = vadd.f32 %v583, %v849
      %v938 = vadd.f32 %v588, %v851
      %v939 = vadd.f32 %v591, %v853
      %v940 = vadd.f32 %v596, %v855
      %v941 = vadd.f32 %v599, %v857
      %v942 = vadd.f32 %v604, %v859
      %v943 = vadd.f32 %v607, %v861
      %v944 = vadd.f32 %v612, %v863
      %v945 = vadd.f32 %v615, %v865
      %v946 = vadd.f32 %v620, %v867
      %v947 = vadd.f32 %v623, %v869
      %v948 = vadd.f32 %v628, %v871
      %v949 = vadd.f32 %v631, %v873
      %v950 = vadd.f32 %v636, %v875
      %v951 = vadd.f32 %v639, %v877
      %v952 = vadd.f32 %v644, %v879
      %v953 = vadd.f32 %v647, %v881
      %vm954 = vcmask 1045504
      %v955 = vrot.slane %v508, 2
      %v956 = vrot.slane %v511, 2
      %v957 = vsel %vm954, %v955, %v956
      %v958 = vrot.slane %v516, 2
      %v959 = vsel %vm954, %v956, %v958
      %v960 = vrot.slane %v519, 2
      %v961 = vsel %vm954, %v958, %v960
      %v962 = vrot.slane %v524, 2
      %v963 = vsel %vm954, %v960, %v962
      %v964 = vrot.slane %v527, 2
      %v965 = vsel %vm954, %v962, %v964
      %v966 = vrot.slane %v532, 2
      %v967 = vsel %vm954, %v964, %v966
      %v968 = vrot.slane %v535, 2
      %v969 = vsel %vm954, %v966, %v968
      %v970 = vrot.slane %v540, 2
      %v971 = vsel %vm954, %v968, %v970
      %v972 = vrot.slane %v543, 2
      %v973 = vsel %vm954, %v970, %v972
      %v974 = vrot.slane %v548, 2
      %v975 = vsel %vm954, %v972, %v974
      %v976 = vrot.slane %v551, 2
      %v977 = vsel %vm954, %v974, %v976
      %v978 = vrot.slane %v556, 2
      %v979 = vsel %vm954, %v976, %v978
      %v980 = vrot.slane %v559, 2
      %v981 = vsel %vm954, %v978, %v980
      %v982 = vrot.slane %v564, 2
      %v983 = vsel %vm954, %v980, %v982
      %v984 = vrot.slane %v567, 2
      %v985 = vsel %vm954, %v982, %v984
      %v986 = vrot.slane %v572, 2
      %v987 = vsel %vm954, %v984, %v986
      %v988 = vrot.slane %v575, 2
      %v989 = vsel %vm954, %v986, %v988
      %v990 = vrot.slane %v580, 2
      %v991 = vsel %vm954, %v988, %v990
      %v992 = vrot.slane %v583, 2
      %v993 = vsel %vm954, %v990, %v992
      %v994 = vrot.slane %v588, 2
      %v995 = vsel %vm954, %v992, %v994
      %v996 = vrot.slane %v591, 2
      %v997 = vsel %vm954, %v994, %v996
      %v998 = vrot.slane %v596, 2
      %v999 = vsel %vm954, %v996, %v998
      %v1000 = vrot.slane %v599, 2
      %v1001 = vsel %vm954, %v998, %v1000
      %v1002 = vrot.slane %v604, 2
      %v1003 = vsel %vm954, %v1000, %v1002
      %v1004 = vrot.slane %v607, 2
      %v1005 = vsel %vm954, %v1002, %v1004
      %v1006 = vrot.slane %v612, 2
      %v1007 = vsel %vm954, %v1004, %v1006
      %v1008 = vrot.slane %v615, 2
      %v1009 = vsel %vm954, %v1006, %v1008
      %v1010 = vrot.slane %v620, 2
      %v1011 = vsel %vm954, %v1008, %v1010
      %v1012 = vrot.slane %v623, 2
      %v1013 = vsel %vm954, %v1010, %v1012
      %v1014 = vrot.slane %v628, 2
      %v1015 = vsel %vm954, %v1012, %v1014
      %v1016 = vrot.slane %v631, 2
      %v1017 = vsel %vm954, %v1014, %v1016
      %v1018 = vrot.slane %v636, 2
      %v1019 = vsel %vm954, %v1016, %v1018
      %v1020 = vrot.slane %v639, 2
      %v1021 = vsel %vm954, %v1018, %v1020
      %v1022 = vrot.slane %v644, 2
      %v1023 = vsel %vm954, %v1020, %v1022
      %v1024 = vrot.slane %v647, 2
      %v1025 = vsel %vm954, %v1022, %v1024
      %v1026 = vrot.slane %v652, 2
      %v1027 = vsel %vm954, %v1024, %v1026
      %1028 = vrot.lane.b32.xlu0 %v957, 84
      %v1029 = vpop.permute.xlu0 %1028
      %1030 = vrot.lane.b32.xlu0 %v959, 84
      %v1031 = vpop.permute.xlu0 %1030
      %1032 = vrot.lane.b32.xlu0 %v961, 84
      %v1033 = vpop.permute.xlu0 %1032
      %1034 = vrot.lane.b32.xlu0 %v963, 84
      %v1035 = vpop.permute.xlu0 %1034
      %1036 = vrot.lane.b32.xlu0 %v965, 84
      %v1037 = vpop.permute.xlu0 %1036
      %1038 = vrot.lane.b32.xlu0 %v967, 84
      %v1039 = vpop.permute.xlu0 %1038
      %1040 = vrot.lane.b32.xlu0 %v969, 84
      %v1041 = vpop.permute.xlu0 %1040
      %1042 = vrot.lane.b32.xlu0 %v971, 84
      %v1043 = vpop.permute.xlu0 %1042
      %1044 = vrot.lane.b32.xlu0 %v973, 84
      %v1045 = vpop.permute.xlu0 %1044
      %1046 = vrot.lane.b32.xlu0 %v975, 84
      %v1047 = vpop.permute.xlu0 %1046
      %1048 = vrot.lane.b32.xlu0 %v977, 84
      %v1049 = vpop.permute.xlu0 %1048
      %1050 = vrot.lane.b32.xlu0 %v979, 84
      %v1051 = vpop.permute.xlu0 %1050
      %1052 = vrot.lane.b32.xlu0 %v981, 84
      %v1053 = vpop.permute.xlu0 %1052
      %1054 = vrot.lane.b32.xlu0 %v983, 84
      %v1055 = vpop.permute.xlu0 %1054
      %1056 = vrot.lane.b32.xlu0 %v985, 84
      %v1057 = vpop.permute.xlu0 %1056
      %1058 = vrot.lane.b32.xlu0 %v987, 84
      %v1059 = vpop.permute.xlu0 %1058
      %1060 = vrot.lane.b32.xlu0 %v989, 84
      %v1061 = vpop.permute.xlu0 %1060
      %1062 = vrot.lane.b32.xlu0 %v991, 84
      %v1063 = vpop.permute.xlu0 %1062
      %1064 = vrot.lane.b32.xlu0 %v993, 84
      %v1065 = vpop.permute.xlu0 %1064
      %1066 = vrot.lane.b32.xlu0 %v995, 84
      %v1067 = vpop.permute.xlu0 %1066
      %1068 = vrot.lane.b32.xlu0 %v997, 84
      %v1069 = vpop.permute.xlu0 %1068
      %1070 = vrot.lane.b32.xlu0 %v999, 84
      %v1071 = vpop.permute.xlu0 %1070
      %1072 = vrot.lane.b32.xlu0 %v1001, 84
      %v1073 = vpop.permute.xlu0 %1072
      %1074 = vrot.lane.b32.xlu0 %v1003, 84
      %v1075 = vpop.permute.xlu0 %1074
      %1076 = vrot.lane.b32.xlu0 %v1005, 84
      %v1077 = vpop.permute.xlu0 %1076
      %1078 = vrot.lane.b32.xlu0 %v1007, 84
      %v1079 = vpop.permute.xlu0 %1078
      %1080 = vrot.lane.b32.xlu0 %v1009, 84
      %v1081 = vpop.permute.xlu0 %1080
      %1082 = vrot.lane.b32.xlu0 %v1011, 84
      %v1083 = vpop.permute.xlu0 %1082
      %1084 = vrot.lane.b32.xlu0 %v1013, 84
      %v1085 = vpop.permute.xlu0 %1084
      %1086 = vrot.lane.b32.xlu0 %v1015, 84
      %v1087 = vpop.permute.xlu0 %1086
      %1088 = vrot.lane.b32.xlu0 %v1017, 84
      %v1089 = vpop.permute.xlu0 %1088
      %1090 = vrot.lane.b32.xlu0 %v1019, 84
      %v1091 = vpop.permute.xlu0 %1090
      %1092 = vrot.lane.b32.xlu0 %v1021, 84
      %v1093 = vpop.permute.xlu0 %1092
      %1094 = vrot.lane.b32.xlu0 %v1023, 84
      %v1095 = vpop.permute.xlu0 %1094
      %1096 = vrot.lane.b32.xlu0 %v1025, 84
      %v1097 = vpop.permute.xlu0 %1096
      %1098 = vrot.lane.b32.xlu0 %v1027, 84
      %v1099 = vpop.permute.xlu0 %1098
      %v1136 = vadd.f32 %v918, %v1029
      %v1137 = vadd.f32 %v919, %v1031
      %v1138 = vadd.f32 %v920, %v1033
      %v1139 = vadd.f32 %v921, %v1035
      %v1140 = vadd.f32 %v922, %v1037
      %v1141 = vadd.f32 %v923, %v1039
      %v1142 = vadd.f32 %v924, %v1041
      %v1143 = vadd.f32 %v925, %v1043
      %v1144 = vadd.f32 %v926, %v1045
      %v1145 = vadd.f32 %v927, %v1047
      %v1146 = vadd.f32 %v928, %v1049
      %v1147 = vadd.f32 %v929, %v1051
      %v1148 = vadd.f32 %v930, %v1053
      %v1149 = vadd.f32 %v931, %v1055
      %v1150 = vadd.f32 %v932, %v1057
      %v1151 = vadd.f32 %v933, %v1059
      %v1152 = vadd.f32 %v934, %v1061
      %v1153 = vadd.f32 %v935, %v1063
      %v1154 = vadd.f32 %v936, %v1065
      %v1155 = vadd.f32 %v937, %v1067
      %v1156 = vadd.f32 %v938, %v1069
      %v1157 = vadd.f32 %v939, %v1071
      %v1158 = vadd.f32 %v940, %v1073
      %v1159 = vadd.f32 %v941, %v1075
      %v1160 = vadd.f32 %v942, %v1077
      %v1161 = vadd.f32 %v943, %v1079
      %v1162 = vadd.f32 %v944, %v1081
      %v1163 = vadd.f32 %v945, %v1083
      %v1164 = vadd.f32 %v946, %v1085
      %v1165 = vadd.f32 %v947, %v1087
      %v1166 = vadd.f32 %v948, %v1089
      %v1167 = vadd.f32 %v949, %v1091
      %v1168 = vadd.f32 %v950, %v1093
      %v1169 = vadd.f32 %v951, %v1095
      %v1170 = vadd.f32 %v952, %v1097
      %v1171 = vadd.f32 %v953, %v1099
      %v1172 = vadd.f32 %v663, %v1136
      %v1173 = vadd.f32 %v664, %v1137
      %v1174 = vadd.f32 %v665, %v1138
      %v1175 = vadd.f32 %v666, %v1139
      %v1176 = vadd.f32 %v667, %v1140
      %v1177 = vadd.f32 %v668, %v1141
      %v1178 = vadd.f32 %v669, %v1142
      %v1179 = vadd.f32 %v670, %v1143
      %v1180 = vadd.f32 %v671, %v1144
      %v1181 = vadd.f32 %v672, %v1145
      %v1182 = vadd.f32 %v673, %v1146
      %v1183 = vadd.f32 %v674, %v1147
      %v1184 = vadd.f32 %v675, %v1148
      %v1185 = vadd.f32 %v676, %v1149
      %v1186 = vadd.f32 %v677, %v1150
      %v1187 = vadd.f32 %v678, %v1151
      %v1188 = vadd.f32 %v679, %v1152
      %v1189 = vadd.f32 %v680, %v1153
      %v1190 = vadd.f32 %v681, %v1154
      %v1191 = vadd.f32 %v682, %v1155
      %v1192 = vadd.f32 %v683, %v1156
      %v1193 = vadd.f32 %v684, %v1157
      %v1194 = vadd.f32 %v685, %v1158
      %v1195 = vadd.f32 %v686, %v1159
      %v1196 = vadd.f32 %v687, %v1160
      %v1197 = vadd.f32 %v688, %v1161
      %v1198 = vadd.f32 %v689, %v1162
      %v1199 = vadd.f32 %v690, %v1163
      %v1200 = vadd.f32 %v691, %v1164
      %v1201 = vadd.f32 %v692, %v1165
      %v1202 = vadd.f32 %v693, %v1166
      %v1203 = vadd.f32 %v694, %v1167
      %v1204 = vadd.f32 %v695, %v1168
      %v1205 = vadd.f32 %v696, %v1169
      %v1206 = vadd.f32 %v697, %v1170
      %v1207 = vadd.f32 %v698, %v1171
      %1208 = vst.msk [vmem:[%s206] sm:$0xff] %vm215, %v1172
      %1209 = vst.msk [vmem:[%s206 + $0x8] sm:$0xff] %vm215, %v1173
      %1210 = vst.msk [vmem:[%s206 + $0x10] sm:$0xff] %vm215, %v1174
      %1211 = vst.msk [vmem:[%s206 + $0x18] sm:$0xff] %vm215, %v1175
      %1212 = vst.msk [vmem:[%s206 + $0x20] sm:$0xff] %vm215, %v1176
      %1213 = vst.msk [vmem:[%s206 + $0x28] sm:$0xff] %vm215, %v1177
      %1214 = vst.msk [vmem:[%s206 + $0x30] sm:$0xff] %vm215, %v1178
      %1215 = vst.msk [vmem:[%s206 + $0x38] sm:$0xff] %vm215, %v1179
      %1216 = vst.msk [vmem:[%s206 + $0x40] sm:$0xff] %vm215, %v1180
      %1217 = vst.msk [vmem:[%s206 + $0x48] sm:$0xff] %vm215, %v1181
      %1218 = vst.msk [vmem:[%s206 + $0x50] sm:$0xff] %vm215, %v1182
      %1219 = vst.msk [vmem:[%s206 + $0x58] sm:$0xff] %vm215, %v1183
      %1220 = vst.msk [vmem:[%s206 + $0x60] sm:$0xff] %vm215, %v1184
      %1221 = vst.msk [vmem:[%s206 + $0x68] sm:$0xff] %vm215, %v1185
      %1222 = vst.msk [vmem:[%s206 + $0x70] sm:$0xff] %vm215, %v1186
      %1223 = vst.msk [vmem:[%s206 + $0x78] sm:$0xff] %vm215, %v1187
      %1224 = vst.msk [vmem:[%s206 + $0x80] sm:$0xff] %vm215, %v1188
      %1225 = vst.msk [vmem:[%s206 + $0x88] sm:$0xff] %vm215, %v1189
      %1226 = vst.msk [vmem:[%s206 + $0x90] sm:$0xff] %vm215, %v1190
      %1227 = vst.msk [vmem:[%s206 + $0x98] sm:$0xff] %vm215, %v1191
      %1228 = vst.msk [vmem:[%s206 + $0xa0] sm:$0xff] %vm215, %v1192
      %1229 = vst.msk [vmem:[%s206 + $0xa8] sm:$0xff] %vm215, %v1193
      %1230 = vst.msk [vmem:[%s206 + $0xb0] sm:$0xff] %vm215, %v1194
      %1231 = vst.msk [vmem:[%s206 + $0xb8] sm:$0xff] %vm215, %v1195
      %1232 = vst.msk [vmem:[%s206 + $0xc0] sm:$0xff] %vm215, %v1196
      %1233 = vst.msk [vmem:[%s206 + $0xc8] sm:$0xff] %vm215, %v1197
      %1234 = vst.msk [vmem:[%s206 + $0xd0] sm:$0xff] %vm215, %v1198
      %1235 = vst.msk [vmem:[%s206 + $0xd8] sm:$0xff] %vm215, %v1199
      %1236 = vst.msk [vmem:[%s206 + $0xe0] sm:$0xff] %vm215, %v1200
      %1237 = vst.msk [vmem:[%s206 + $0xe8] sm:$0xff] %vm215, %v1201
      %1238 = vst.msk [vmem:[%s206 + $0xf0] sm:$0xff] %vm215, %v1202
      %1239 = vst.msk [vmem:[%s206 + $0xf8] sm:$0xff] %vm215, %v1203
      %1240 = vst.msk [vmem:[%s206 + $0x100] sm:$0xff] %vm215, %v1204
      %1241 = vst.msk [vmem:[%s206 + $0x108] sm:$0xff] %vm215, %v1205
      %1242 = vst.msk [vmem:[%s206 + $0x110] sm:$0xff] %vm215, %v1206
      %1243 = vst.msk [vmem:[%s206 + $0x118] sm:$0xff] %vm215, %v1207
      %v1244 = vld [vmem:[%s197 + $0x8] sm:$0xe]
      %v1245 = vld [vmem:[%s197 + $0xc] sm:$0xf]
      %v1246 = vld [vmem:[%s197 + $0x10] sm:$0xf]
      %v1247 = vld [vmem:[%s197 + $0x14] sm:$0xf]
      %v1248 = vld [vmem:[%s197 + $0x18] sm:$0xf]
      %v1249 = vld [vmem:[%s197 + $0x1c] sm:$0xf]
      %v1250 = vld [vmem:[%s197 + $0x20] sm:$0xf]
      %v1251 = vld [vmem:[%s197 + $0x24] sm:$0xf]
      %v1252 = vld [vmem:[%s197 + $0x28] sm:$0xf]
      %v1253 = vld [vmem:[%s197 + $0x2c] sm:$0xf]
      %v1254 = vld [vmem:[%s197 + $0x30] sm:$0xf]
      %v1255 = vld [vmem:[%s197 + $0x34] sm:$0xf]
      %v1256 = vld [vmem:[%s197 + $0x38] sm:$0xf]
      %v1257 = vld [vmem:[%s197 + $0x3c] sm:$0xf]
      %v1258 = vld [vmem:[%s197 + $0x40] sm:$0xf]
      %v1259 = vld [vmem:[%s197 + $0x44] sm:$0xf]
      %v1260 = vld [vmem:[%s197 + $0x48] sm:$0xf]
      %v1261 = vld [vmem:[%s197 + $0x4c] sm:$0xf]
      %v1262 = vld [vmem:[%s197 + $0x50] sm:$0xf]
      %v1263 = vld [vmem:[%s197 + $0x54] sm:$0xf]
      %v1264 = vld [vmem:[%s197 + $0x58] sm:$0xf]
      %v1265 = vld [vmem:[%s197 + $0x5c] sm:$0xf]
      %v1266 = vld [vmem:[%s197 + $0x60] sm:$0xf]
      %v1267 = vld [vmem:[%s197 + $0x64] sm:$0xf]
      %v1268 = vld [vmem:[%s197 + $0x68] sm:$0xf]
      %v1269 = vld [vmem:[%s197 + $0x6c] sm:$0xf]
      %v1270 = vld [vmem:[%s197 + $0x70] sm:$0xf]
      %v1271 = vld [vmem:[%s197 + $0x74] sm:$0xf]
      %v1272 = vld [vmem:[%s197 + $0x78] sm:$0xf]
      %v1273 = vld [vmem:[%s197 + $0x7c] sm:$0xf]
      %v1274 = vld [vmem:[%s197 + $0x80] sm:$0xf]
      %v1275 = vld [vmem:[%s197 + $0x84] sm:$0xf]
      %v1276 = vld [vmem:[%s197 + $0x88] sm:$0xf]
      %v1277 = vld [vmem:[%s197 + $0x8c] sm:$0xf]
      %v1278 = vld [vmem:[%s197 + $0x90] sm:$0xf]
      %v1279 = vld [vmem:[%s197 + $0x94] sm:$0xf]
      %v1280 = vld [vmem:[%s197 + $0x98] sm:$0xf]
      %v1281 = vld [vmem:[%s197 + $0x9c] sm:$0xf]
      %v1282 = vld [vmem:[%s197 + $0xa0] sm:$0x3]
      %s1283 = scalar_lea.vmem %s1, 64
      %v1284 = vld [vmem:[%s1283] sm:$0xf]
      %v1285 = vld [vmem:[%s1283 + $0x4] sm:$0xf]
      %v1286 = vld [vmem:[%s1283 + $0x8] sm:$0xf]
      %v1287 = vld [vmem:[%s1283 + $0xc] sm:$0xf]
      %v1288 = vld [vmem:[%s1283 + $0x10] sm:$0xf]
      %v1289 = vld [vmem:[%s1283 + $0x14] sm:$0xf]
      %v1290 = vld [vmem:[%s1283 + $0x18] sm:$0xf]
      %v1291 = vld [vmem:[%s1283 + $0x1c] sm:$0xf]
      %v1292 = vld [vmem:[%s1283 + $0x20] sm:$0xf]
      %v1293 = vld [vmem:[%s1283 + $0x24] sm:$0xf]
      %v1294 = vld [vmem:[%s1283 + $0x28] sm:$0xf]
      %v1295 = vld [vmem:[%s1283 + $0x2c] sm:$0xf]
      %v1296 = vld [vmem:[%s1283 + $0x30] sm:$0xf]
      %v1297 = vld [vmem:[%s1283 + $0x34] sm:$0xf]
      %v1298 = vld [vmem:[%s1283 + $0x38] sm:$0xf]
      %v1299 = vld [vmem:[%s1283 + $0x3c] sm:$0xf]
      %v1339 = vunpack.c.l.b16 %v1244
      %v1340 = vunpack.c.l.b16 %v1245
      %v1341 = vunpack.c.l.b16 %v1246
      %v1342 = vunpack.c.l.b16 %v1247
      %v1343 = vunpack.c.l.b16 %v1248
      %v1344 = vunpack.c.l.b16 %v1249
      %v1345 = vunpack.c.l.b16 %v1250
      %v1346 = vunpack.c.l.b16 %v1251
      %v1347 = vunpack.c.l.b16 %v1252
      %v1348 = vunpack.c.l.b16 %v1253
      %v1349 = vunpack.c.l.b16 %v1254
      %v1350 = vunpack.c.l.b16 %v1255
      %v1351 = vunpack.c.l.b16 %v1256
      %v1352 = vunpack.c.l.b16 %v1257
      %v1353 = vunpack.c.l.b16 %v1258
      %v1354 = vunpack.c.l.b16 %v1259
      %v1355 = vunpack.c.l.b16 %v1260
      %v1356 = vunpack.c.l.b16 %v1261
      %v1357 = vunpack.c.l.b16 %v1262
      %v1358 = vunpack.c.l.b16 %v1263
      %v1359 = vunpack.c.l.b16 %v1264
      %v1360 = vunpack.c.l.b16 %v1265
      %v1361 = vunpack.c.l.b16 %v1266
      %v1362 = vunpack.c.l.b16 %v1267
      %v1363 = vunpack.c.l.b16 %v1268
      %v1364 = vunpack.c.l.b16 %v1269
      %v1365 = vunpack.c.l.b16 %v1270
      %v1366 = vunpack.c.l.b16 %v1271
      %v1367 = vunpack.c.l.b16 %v1272
      %v1368 = vunpack.c.l.b16 %v1273
      %v1369 = vunpack.c.l.b16 %v1274
      %v1370 = vunpack.c.l.b16 %v1275
      %v1371 = vunpack.c.l.b16 %v1276
      %v1372 = vunpack.c.l.b16 %v1277
      %v1373 = vunpack.c.l.b16 %v1278
      %v1374 = vunpack.c.l.b16 %v1279
      %v1375 = vunpack.c.l.b16 %v1280
      %v1376 = vunpack.c.l.b16 %v1281
      %v1377 = vunpack.c.l.b16 %v1282
      %v1378 = vpack.c.b16 %v1340, %v1339
      %v1379 = vpack.c.b16 %v1342, %v1341
      %v1380 = vpack.c.b16 %v1344, %v1343
      %v1381 = vpack.c.b16 %v1346, %v1345
      %v1382 = vpack.c.b16 %v1348, %v1347
      %v1383 = vpack.c.b16 %v1350, %v1349
      %v1384 = vpack.c.b16 %v1352, %v1351
      %v1385 = vpack.c.b16 %v1354, %v1353
      %v1386 = vpack.c.b16 %v1356, %v1355
      %v1387 = vpack.c.b16 %v1358, %v1357
      %v1388 = vpack.c.b16 %v1360, %v1359
      %v1389 = vpack.c.b16 %v1362, %v1361
      %v1390 = vpack.c.b16 %v1364, %v1363
      %v1391 = vpack.c.b16 %v1366, %v1365
      %v1392 = vpack.c.b16 %v1368, %v1367
      %v1393 = vpack.c.b16 %v1370, %v1369
      %v1394 = vpack.c.b16 %v1372, %v1371
      %v1395 = vpack.c.b16 %v1374, %v1373
      %v1396 = vpack.c.b16 %v1376, %v1375
      %v1397 = vpack.c.b16 %v1377, %v1377
      %vm1398 = vcmask 1046528
      %v1399 = vrot.slane %v1378, 1
      %v1400 = vrot.slane %v1379, 1
      %v1401 = vsel %vm1398, %v1399, %v1400
      %v1402 = vrot.slane %v1380, 1
      %v1403 = vsel %vm1398, %v1400, %v1402
      %v1404 = vrot.slane %v1381, 1
      %v1405 = vsel %vm1398, %v1402, %v1404
      %v1406 = vrot.slane %v1382, 1
      %v1407 = vsel %vm1398, %v1404, %v1406
      %v1408 = vrot.slane %v1383, 1
      %v1409 = vsel %vm1398, %v1406, %v1408
      %v1410 = vrot.slane %v1384, 1
      %v1411 = vsel %vm1398, %v1408, %v1410
      %v1412 = vrot.slane %v1385, 1
      %v1413 = vsel %vm1398, %v1410, %v1412
      %v1414 = vrot.slane %v1386, 1
      %v1415 = vsel %vm1398, %v1412, %v1414
      %v1416 = vrot.slane %v1387, 1
      %v1417 = vsel %vm1398, %v1414, %v1416
      %v1418 = vrot.slane %v1388, 1
      %v1419 = vsel %vm1398, %v1416, %v1418
      %v1420 = vrot.slane %v1389, 1
      %v1421 = vsel %vm1398, %v1418, %v1420
      %v1422 = vrot.slane %v1390, 1
      %v1423 = vsel %vm1398, %v1420, %v1422
      %v1424 = vrot.slane %v1391, 1
      %v1425 = vsel %vm1398, %v1422, %v1424
      %v1426 = vrot.slane %v1392, 1
      %v1427 = vsel %vm1398, %v1424, %v1426
      %v1428 = vrot.slane %v1393, 1
      %v1429 = vsel %vm1398, %v1426, %v1428
      %v1430 = vrot.slane %v1394, 1
      %v1431 = vsel %vm1398, %v1428, %v1430
      %v1432 = vrot.slane %v1395, 1
      %v1433 = vsel %vm1398, %v1430, %v1432
      %v1434 = vrot.slane %v1396, 1
      %v1435 = vsel %vm1398, %v1432, %v1434
      %v1436 = vrot.slane %v1397, 1
      %v1437 = vsel %vm1398, %v1434, %v1436
      %v1474 = vunpack.c.l.b16 %v1284
      %v1475 = vunpack.c.l.b16 %v1285
      %v1476 = vunpack.c.l.b16 %v1286
      %v1477 = vunpack.c.l.b16 %v1287
      %v1478 = vunpack.c.l.b16 %v1288
      %v1479 = vunpack.c.l.b16 %v1289
      %v1480 = vunpack.c.l.b16 %v1290
      %v1481 = vunpack.c.l.b16 %v1291
      %v1482 = vunpack.c.l.b16 %v1292
      %v1483 = vunpack.c.l.b16 %v1293
      %v1484 = vunpack.c.l.b16 %v1294
      %v1485 = vunpack.c.l.b16 %v1295
      %v1486 = vunpack.c.l.b16 %v1296
      %v1487 = vunpack.c.l.b16 %v1297
      %v1488 = vunpack.c.l.b16 %v1298
      %v1489 = vunpack.c.l.b16 %v1299
      %v1490 = vpack.c.b16 %v1475, %v1474
      %v1491 = vpack.c.b16 %v1477, %v1476
      %v1492 = vpack.c.b16 %v1479, %v1478
      %v1493 = vpack.c.b16 %v1481, %v1480
      %v1494 = vpack.c.b16 %v1483, %v1482
      %v1495 = vpack.c.b16 %v1485, %v1484
      %v1496 = vpack.c.b16 %v1487, %v1486
      %v1497 = vpack.c.b16 %v1489, %v1488
      %1506 = vmatprep.subr.bf16.mxu0 0
      %1507 = vmatpush1.bf16.msra.mxu0 %v1490
      %1508 = vmatprep.subr.bf16.mxu0 0
      %1509 = vmatpush1.bf16.msra.mxu0 %v1491
      %1510 = vmatprep.subr.bf16.mxu0 0
      %1511 = vmatpush1.bf16.msra.mxu0 %v1492
      %1512 = vmatprep.subr.bf16.mxu0 0
      %1513 = vmatpush1.bf16.msra.mxu0 %v1493
      %1514 = vmatprep.subr.bf16.mxu0 0
      %1515 = vmatpush1.bf16.msra.mxu0 %v1494
      %1516 = vmatprep.subr.bf16.mxu0 0
      %1517 = vmatpush1.bf16.msra.mxu0 %v1495
      %1518 = vmatprep.subr.bf16.mxu0 0
      %1519 = vmatpush1.bf16.msra.mxu0 %v1496
      %1520 = vmatprep.subr.bf16.mxu0 0
      %1521 = vmatpush1.bf16.msra.mxu0 %v1497
      %1522 = vmatprep.subr.bf16.mxu0 0
      %1523 = vmatpush1.bf16.msra.mxu0 0
      %1524 = vmatprep.subr.bf16.mxu0 0
      %1525 = vmatpush1.bf16.msra.mxu0 0
      %1526 = vmatprep.subr.bf16.mxu0 0
      %1527 = vmatpush1.bf16.msra.mxu0 0
      %1528 = vmatprep.subr.bf16.mxu0 0
      %1529 = vmatpush1.bf16.msra.mxu0 0
      %1530 = vmatprep.subr.bf16.mxu0 0
      %1531 = vmatpush1.bf16.msra.mxu0 0
      %1532 = vmatprep.subr.bf16.mxu0 0
      %1533 = vmatpush1.bf16.msra.mxu0 0
      %1534 = vmatprep.subr.bf16.mxu0 0
      %1535 = vmatpush1.bf16.msra.mxu0 0
      %1536 = vmatprep.subr.bf16.mxu0 0
      %1537 = vmatpush1.bf16.msra.mxu0 0
      %1538 = vmatprep.mubr.bf16.mxu0 0
      %1539 = vmatmul.mubr.bf16.gmra.mrb[0].mxu0 %v1401
      %v1540 = vpop.f32.mrb[0].mxu0
      %v1541 = vadd.f32 0.0, %v1540
      %v1542 = vpop.f32.mrb[0].mxu0
      %v1543 = vpop.f32.mrb[0].mxu0
      %v1544 = vadd.f32 0.0, %v1543
      %v1545 = vpop.f32.mrb[0].mxu0
      %1546 = vmatprep.mubr.bf16.mxu0 0
      %1547 = vmatmul.mubr.bf16.gmra.mrb[0].mxu0 %v1403
      %v1548 = vpop.f32.mrb[0].mxu0
      %v1549 = vadd.f32 0.0, %v1548
      %v1550 = vpop.f32.mrb[0].mxu0
      %v1551 = vpop.f32.mrb[0].mxu0
      %v1552 = vadd.f32 0.0, %v1551
      %v1553 = vpop.f32.mrb[0].mxu0
      %1554 = vmatprep.mubr.bf16.mxu0 0
      %1555 = vmatmul.mubr.bf16.gmra.mrb[0].mxu0 %v1405
      %v1556 = vpop.f32.mrb[0].mxu0
      %v1557 = vadd.f32 0.0, %v1556
      %v1558 = vpop.f32.mrb[0].mxu0
      %v1559 = vpop.f32.mrb[0].mxu0
      %v1560 = vadd.f32 0.0, %v1559
      %v1561 = vpop.f32.mrb[0].mxu0
      %1562 = vmatprep.mubr.bf16.mxu0 0
      %1563 = vmatmul.mubr.bf16.gmra.mrb[0].mxu0 %v1407
      %v1564 = vpop.f32.mrb[0].mxu0
      %v1565 = vadd.f32 0.0, %v1564
      %v1566 = vpop.f32.mrb[0].mxu0
      %v1567 = vpop.f32.mrb[0].mxu0
      %v1568 = vadd.f32 0.0, %v1567
      %v1569 = vpop.f32.mrb[0].mxu0
      %1570 = vmatprep.mubr.bf16.mxu0 0
      %1571 = vmatmul.mubr.bf16.gmra.mrb[0].mxu0 %v1409
      %v1572 = vpop.f32.mrb[0].mxu0
      %v1573 = vadd.f32 0.0, %v1572
      %v1574 = vpop.f32.mrb[0].mxu0
      %v1575 = vpop.f32.mrb[0].mxu0
      %v1576 = vadd.f32 0.0, %v1575
      %v1577 = vpop.f32.mrb[0].mxu0
      %1578 = vmatprep.mubr.bf16.mxu0 0
      %1579 = vmatmul.mubr.bf16.gmra.mrb[0].mxu0 %v1411
      %v1580 = vpop.f32.mrb[0].mxu0
      %v1581 = vadd.f32 0.0, %v1580
      %v1582 = vpop.f32.mrb[0].mxu0
      %v1583 = vpop.f32.mrb[0].mxu0
      %v1584 = vadd.f32 0.0, %v1583
      %v1585 = vpop.f32.mrb[0].mxu0
      %1586 = vmatprep.mubr.bf16.mxu0 0
      %1587 = vmatmul.mubr.bf16.gmra.mrb[0].mxu0 %v1413
      %v1588 = vpop.f32.mrb[0].mxu0
      %v1589 = vadd.f32 0.0, %v1588
      %v1590 = vpop.f32.mrb[0].mxu0
      %v1591 = vpop.f32.mrb[0].mxu0
      %v1592 = vadd.f32 0.0, %v1591
      %v1593 = vpop.f32.mrb[0].mxu0
      %1594 = vmatprep.mubr.bf16.mxu0 0
      %1595 = vmatmul.mubr.bf16.gmra.mrb[0].mxu0 %v1415
      %v1596 = vpop.f32.mrb[0].mxu0
      %v1597 = vadd.f32 0.0, %v1596
      %v1598 = vpop.f32.mrb[0].mxu0
      %v1599 = vpop.f32.mrb[0].mxu0
      %v1600 = vadd.f32 0.0, %v1599
      %v1601 = vpop.f32.mrb[0].mxu0
      %1602 = vmatprep.mubr.bf16.mxu0 0
      %1603 = vmatmul.mubr.bf16.gmra.mrb[0].mxu0 %v1417
      %v1604 = vpop.f32.mrb[0].mxu0
      %v1605 = vadd.f32 0.0, %v1604
      %v1606 = vpop.f32.mrb[0].mxu0
      %v1607 = vpop.f32.mrb[0].mxu0
      %v1608 = vadd.f32 0.0, %v1607
      %v1609 = vpop.f32.mrb[0].mxu0
      %1610 = vmatprep.mubr.bf16.mxu0 0
      %1611 = vmatmul.mubr.bf16.gmra.mrb[0].mxu0 %v1419
      %v1612 = vpop.f32.mrb[0].mxu0
      %v1613 = vadd.f32 0.0, %v1612
      %v1614 = vpop.f32.mrb[0].mxu0
      %v1615 = vpop.f32.mrb[0].mxu0
      %v1616 = vadd.f32 0.0, %v1615
      %v1617 = vpop.f32.mrb[0].mxu0
      %1618 = vmatprep.mubr.bf16.mxu0 0
      %1619 = vmatmul.mubr.bf16.gmra.mrb[0].mxu0 %v1421
      %v1620 = vpop.f32.mrb[0].mxu0
      %v1621 = vadd.f32 0.0, %v1620
      %v1622 = vpop.f32.mrb[0].mxu0
      %v1623 = vpop.f32.mrb[0].mxu0
      %v1624 = vadd.f32 0.0, %v1623
      %v1625 = vpop.f32.mrb[0].mxu0
      %1626 = vmatprep.mubr.bf16.mxu0 0
      %1627 = vmatmul.mubr.bf16.gmra.mrb[0].mxu0 %v1423
      %v1628 = vpop.f32.mrb[0].mxu0
      %v1629 = vadd.f32 0.0, %v1628
      %v1630 = vpop.f32.mrb[0].mxu0
      %v1631 = vpop.f32.mrb[0].mxu0
      %v1632 = vadd.f32 0.0, %v1631
      %v1633 = vpop.f32.mrb[0].mxu0
      %1634 = vmatprep.mubr.bf16.mxu0 0
      %1635 = vmatmul.mubr.bf16.gmra.mrb[0].mxu0 %v1425
      %v1636 = vpop.f32.mrb[0].mxu0
      %v1637 = vadd.f32 0.0, %v1636
      %v1638 = vpop.f32.mrb[0].mxu0
      %v1639 = vpop.f32.mrb[0].mxu0
      %v1640 = vadd.f32 0.0, %v1639
      %v1641 = vpop.f32.mrb[0].mxu0
      %1642 = vmatprep.mubr.bf16.mxu0 0
      %1643 = vmatmul.mubr.bf16.gmra.mrb[0].mxu0 %v1427
      %v1644 = vpop.f32.mrb[0].mxu0
      %v1645 = vadd.f32 0.0, %v1644
      %v1646 = vpop.f32.mrb[0].mxu0
      %v1647 = vpop.f32.mrb[0].mxu0
      %v1648 = vadd.f32 0.0, %v1647
      %v1649 = vpop.f32.mrb[0].mxu0
      %1650 = vmatprep.mubr.bf16.mxu0 0
      %1651 = vmatmul.mubr.bf16.gmra.mrb[0].mxu0 %v1429
      %v1652 = vpop.f32.mrb[0].mxu0
      %v1653 = vadd.f32 0.0, %v1652
      %v1654 = vpop.f32.mrb[0].mxu0
      %v1655 = vpop.f32.mrb[0].mxu0
      %v1656 = vadd.f32 0.0, %v1655
      %v1657 = vpop.f32.mrb[0].mxu0
      %1658 = vmatprep.mubr.bf16.mxu0 0
      %1659 = vmatmul.mubr.bf16.gmra.mrb[0].mxu0 %v1431
      %v1660 = vpop.f32.mrb[0].mxu0
      %v1661 = vadd.f32 0.0, %v1660
      %v1662 = vpop.f32.mrb[0].mxu0
      %v1663 = vpop.f32.mrb[0].mxu0
      %v1664 = vadd.f32 0.0, %v1663
      %v1665 = vpop.f32.mrb[0].mxu0
      %1666 = vmatprep.mubr.bf16.mxu0 0
      %1667 = vmatmul.mubr.bf16.gmra.mrb[0].mxu0 %v1433
      %v1668 = vpop.f32.mrb[0].mxu0
      %v1669 = vadd.f32 0.0, %v1668
      %v1670 = vpop.f32.mrb[0].mxu0
      %v1671 = vpop.f32.mrb[0].mxu0
      %v1672 = vadd.f32 0.0, %v1671
      %v1673 = vpop.f32.mrb[0].mxu0
      %1674 = vmatprep.mubr.bf16.mxu0 0
      %1675 = vmatmul.mubr.bf16.gmra.mrb[0].mxu0 %v1435
      %v1676 = vpop.f32.mrb[0].mxu0
      %v1677 = vadd.f32 0.0, %v1676
      %v1678 = vpop.f32.mrb[0].mxu0
      %v1679 = vpop.f32.mrb[0].mxu0
      %v1680 = vadd.f32 0.0, %v1679
      %v1681 = vpop.f32.mrb[0].mxu0
      %1682 = vmatprep.mubr.bf16.mxu0 0
      %1683 = vmatmul.mubr.bf16.gmra.mrb[0].mxu0 %v1437
      %v1684 = vpop.f32.mrb[0].mxu0
      %v1685 = vadd.f32 0.0, %v1684
      %v1686 = vpop.f32.mrb[0].mxu0
      %v1687 = vpop.f32.mrb[0].mxu0
      %v1688 = vpop.f32.mrb[0].mxu0
      %1689 = vmatprep.mubr.bf16.mxu0 0
      %1690 = vmatmul.mubr.bf16.gmra.mrb[0].mxu0 %v1436
      %v1691 = vpop.f32.mrb[0].mxu0
      %v1692 = vpop.f32.mrb[0].mxu0
      %v1693 = vpop.f32.mrb[0].mxu0
      %v1694 = vpop.f32.mrb[0].mxu0
      %1695 = vdwg.mxu0
      %v1696 = vld [vmem:[%s206] sm:$0xff]
      %v1697 = vld [vmem:[%s206 + $0x8] sm:$0xff]
      %v1698 = vld [vmem:[%s206 + $0x10] sm:$0xff]
      %v1699 = vld [vmem:[%s206 + $0x18] sm:$0xff]
      %v1700 = vld [vmem:[%s206 + $0x20] sm:$0xff]
      %v1701 = vld [vmem:[%s206 + $0x28] sm:$0xff]
      %v1702 = vld [vmem:[%s206 + $0x30] sm:$0xff]
      %v1703 = vld [vmem:[%s206 + $0x38] sm:$0xff]
      %v1704 = vld [vmem:[%s206 + $0x40] sm:$0xff]
      %v1705 = vld [vmem:[%s206 + $0x48] sm:$0xff]
      %v1706 = vld [vmem:[%s206 + $0x50] sm:$0xff]
      %v1707 = vld [vmem:[%s206 + $0x58] sm:$0xff]
      %v1708 = vld [vmem:[%s206 + $0x60] sm:$0xff]
      %v1709 = vld [vmem:[%s206 + $0x68] sm:$0xff]
      %v1710 = vld [vmem:[%s206 + $0x70] sm:$0xff]
      %v1711 = vld [vmem:[%s206 + $0x78] sm:$0xff]
      %v1712 = vld [vmem:[%s206 + $0x80] sm:$0xff]
      %v1713 = vld [vmem:[%s206 + $0x88] sm:$0xff]
      %v1714 = vld [vmem:[%s206 + $0x90] sm:$0xff]
      %v1715 = vld [vmem:[%s206 + $0x98] sm:$0xff]
      %v1716 = vld [vmem:[%s206 + $0xa0] sm:$0xff]
      %v1717 = vld [vmem:[%s206 + $0xa8] sm:$0xff]
      %v1718 = vld [vmem:[%s206 + $0xb0] sm:$0xff]
      %v1719 = vld [vmem:[%s206 + $0xb8] sm:$0xff]
      %v1720 = vld [vmem:[%s206 + $0xc0] sm:$0xff]
      %v1721 = vld [vmem:[%s206 + $0xc8] sm:$0xff]
      %v1722 = vld [vmem:[%s206 + $0xd0] sm:$0xff]
      %v1723 = vld [vmem:[%s206 + $0xd8] sm:$0xff]
      %v1724 = vld [vmem:[%s206 + $0xe0] sm:$0xff]
      %v1725 = vld [vmem:[%s206 + $0xe8] sm:$0xff]
      %v1726 = vld [vmem:[%s206 + $0xf0] sm:$0xff]
      %v1727 = vld [vmem:[%s206 + $0xf8] sm:$0xff]
      %v1728 = vld [vmem:[%s206 + $0x100] sm:$0xff]
      %v1729 = vld [vmem:[%s206 + $0x108] sm:$0xff]
      %v1730 = vld [vmem:[%s206 + $0x110] sm:$0xff]
      %v1731 = vld [vmem:[%s206 + $0x118] sm:$0xff]
      %v1769 = vrot.slane %v1541, 1
      %v1770 = vrot.slane %v1544, 1
      %v1771 = vsel %vm736, %v1769, %v1770
      %v1772 = vrot.slane %v1549, 1
      %v1773 = vsel %vm736, %v1770, %v1772
      %v1774 = vrot.slane %v1552, 1
      %v1775 = vsel %vm736, %v1772, %v1774
      %v1776 = vrot.slane %v1557, 1
      %v1777 = vsel %vm736, %v1774, %v1776
      %v1778 = vrot.slane %v1560, 1
      %v1779 = vsel %vm736, %v1776, %v1778
      %v1780 = vrot.slane %v1565, 1
      %v1781 = vsel %vm736, %v1778, %v1780
      %v1782 = vrot.slane %v1568, 1
      %v1783 = vsel %vm736, %v1780, %v1782
      %v1784 = vrot.slane %v1573, 1
      %v1785 = vsel %vm736, %v1782, %v1784
      %v1786 = vrot.slane %v1576, 1
      %v1787 = vsel %vm736, %v1784, %v1786
      %v1788 = vrot.slane %v1581, 1
      %v1789 = vsel %vm736, %v1786, %v1788
      %v1790 = vrot.slane %v1584, 1
      %v1791 = vsel %vm736, %v1788, %v1790
      %v1792 = vrot.slane %v1589, 1
      %v1793 = vsel %vm736, %v1790, %v1792
      %v1794 = vrot.slane %v1592, 1
      %v1795 = vsel %vm736, %v1792, %v1794
      %v1796 = vrot.slane %v1597, 1
      %v1797 = vsel %vm736, %v1794, %v1796
      %v1798 = vrot.slane %v1600, 1
      %v1799 = vsel %vm736, %v1796, %v1798
      %v1800 = vrot.slane %v1605, 1
      %v1801 = vsel %vm736, %v1798, %v1800
      %v1802 = vrot.slane %v1608, 1
      %v1803 = vsel %vm736, %v1800, %v1802
      %v1804 = vrot.slane %v1613, 1
      %v1805 = vsel %vm736, %v1802, %v1804
      %v1806 = vrot.slane %v1616, 1
      %v1807 = vsel %vm736, %v1804, %v1806
      %v1808 = vrot.slane %v1621, 1
      %v1809 = vsel %vm736, %v1806, %v1808
      %v1810 = vrot.slane %v1624, 1
      %v1811 = vsel %vm736, %v1808, %v1810
      %v1812 = vrot.slane %v1629, 1
      %v1813 = vsel %vm736, %v1810, %v1812
      %v1814 = vrot.slane %v1632, 1
      %v1815 = vsel %vm736, %v1812, %v1814
      %v1816 = vrot.slane %v1637, 1
      %v1817 = vsel %vm736, %v1814, %v1816
      %v1818 = vrot.slane %v1640, 1
      %v1819 = vsel %vm736, %v1816, %v1818
      %v1820 = vrot.slane %v1645, 1
      %v1821 = vsel %vm736, %v1818, %v1820
      %v1822 = vrot.slane %v1648, 1
      %v1823 = vsel %vm736, %v1820, %v1822
      %v1824 = vrot.slane %v1653, 1
      %v1825 = vsel %vm736, %v1822, %v1824
      %v1826 = vrot.slane %v1656, 1
      %v1827 = vsel %vm736, %v1824, %v1826
      %v1828 = vrot.slane %v1661, 1
      %v1829 = vsel %vm736, %v1826, %v1828
      %v1830 = vrot.slane %v1664, 1
      %v1831 = vsel %vm736, %v1828, %v1830
      %v1832 = vrot.slane %v1669, 1
      %v1833 = vsel %vm736, %v1830, %v1832
      %v1834 = vrot.slane %v1672, 1
      %v1835 = vsel %vm736, %v1832, %v1834
      %v1836 = vrot.slane %v1677, 1
      %v1837 = vsel %vm736, %v1834, %v1836
      %v1838 = vrot.slane %v1680, 1
      %v1839 = vsel %vm736, %v1836, %v1838
      %v1840 = vrot.slane %v1685, 1
      %v1841 = vsel %vm736, %v1838, %v1840
      %1842 = vrot.lane.b32.xlu0 %v1771, 106
      %v1843 = vpop.permute.xlu0 %1842
      %1844 = vrot.lane.b32.xlu0 %v1773, 106
      %v1845 = vpop.permute.xlu0 %1844
      %1846 = vrot.lane.b32.xlu0 %v1775, 106
      %v1847 = vpop.permute.xlu0 %1846
      %1848 = vrot.lane.b32.xlu0 %v1777, 106
      %v1849 = vpop.permute.xlu0 %1848
      %1850 = vrot.lane.b32.xlu0 %v1779, 106
      %v1851 = vpop.permute.xlu0 %1850
      %1852 = vrot.lane.b32.xlu0 %v1781, 106
      %v1853 = vpop.permute.xlu0 %1852
      %1854 = vrot.lane.b32.xlu0 %v1783, 106
      %v1855 = vpop.permute.xlu0 %1854
      %1856 = vrot.lane.b32.xlu0 %v1785, 106
      %v1857 = vpop.permute.xlu0 %1856
      %1858 = vrot.lane.b32.xlu0 %v1787, 106
      %v1859 = vpop.permute.xlu0 %1858
      %1860 = vrot.lane.b32.xlu0 %v1789, 106
      %v1861 = vpop.permute.xlu0 %1860
      %1862 = vrot.lane.b32.xlu0 %v1791, 106
      %v1863 = vpop.permute.xlu0 %1862
      %1864 = vrot.lane.b32.xlu0 %v1793, 106
      %v1865 = vpop.permute.xlu0 %1864
      %1866 = vrot.lane.b32.xlu0 %v1795, 106
      %v1867 = vpop.permute.xlu0 %1866
      %1868 = vrot.lane.b32.xlu0 %v1797, 106
      %v1869 = vpop.permute.xlu0 %1868
      %1870 = vrot.lane.b32.xlu0 %v1799, 106
      %v1871 = vpop.permute.xlu0 %1870
      %1872 = vrot.lane.b32.xlu0 %v1801, 106
      %v1873 = vpop.permute.xlu0 %1872
      %1874 = vrot.lane.b32.xlu0 %v1803, 106
      %v1875 = vpop.permute.xlu0 %1874
      %1876 = vrot.lane.b32.xlu0 %v1805, 106
      %v1877 = vpop.permute.xlu0 %1876
      %1878 = vrot.lane.b32.xlu0 %v1807, 106
      %v1879 = vpop.permute.xlu0 %1878
      %1880 = vrot.lane.b32.xlu0 %v1809, 106
      %v1881 = vpop.permute.xlu0 %1880
      %1882 = vrot.lane.b32.xlu0 %v1811, 106
      %v1883 = vpop.permute.xlu0 %1882
      %1884 = vrot.lane.b32.xlu0 %v1813, 106
      %v1885 = vpop.permute.xlu0 %1884
      %1886 = vrot.lane.b32.xlu0 %v1815, 106
      %v1887 = vpop.permute.xlu0 %1886
      %1888 = vrot.lane.b32.xlu0 %v1817, 106
      %v1889 = vpop.permute.xlu0 %1888
      %1890 = vrot.lane.b32.xlu0 %v1819, 106
      %v1891 = vpop.permute.xlu0 %1890
      %1892 = vrot.lane.b32.xlu0 %v1821, 106
      %v1893 = vpop.permute.xlu0 %1892
      %1894 = vrot.lane.b32.xlu0 %v1823, 106
      %v1895 = vpop.permute.xlu0 %1894
      %1896 = vrot.lane.b32.xlu0 %v1825, 106
      %v1897 = vpop.permute.xlu0 %1896
      %1898 = vrot.lane.b32.xlu0 %v1827, 106
      %v1899 = vpop.permute.xlu0 %1898
      %1900 = vrot.lane.b32.xlu0 %v1829, 106
      %v1901 = vpop.permute.xlu0 %1900
      %1902 = vrot.lane.b32.xlu0 %v1831, 106
      %v1903 = vpop.permute.xlu0 %1902
      %1904 = vrot.lane.b32.xlu0 %v1833, 106
      %v1905 = vpop.permute.xlu0 %1904
      %1906 = vrot.lane.b32.xlu0 %v1835, 106
      %v1907 = vpop.permute.xlu0 %1906
      %1908 = vrot.lane.b32.xlu0 %v1837, 106
      %v1909 = vpop.permute.xlu0 %1908
      %1910 = vrot.lane.b32.xlu0 %v1839, 106
      %v1911 = vpop.permute.xlu0 %1910
      %1912 = vrot.lane.b32.xlu0 %v1841, 106
      %v1913 = vpop.permute.xlu0 %1912
      %v1950 = vadd.f32 %v1541, %v1843
      %v1951 = vadd.f32 %v1544, %v1845
      %v1952 = vadd.f32 %v1549, %v1847
      %v1953 = vadd.f32 %v1552, %v1849
      %v1954 = vadd.f32 %v1557, %v1851
      %v1955 = vadd.f32 %v1560, %v1853
      %v1956 = vadd.f32 %v1565, %v1855
      %v1957 = vadd.f32 %v1568, %v1857
      %v1958 = vadd.f32 %v1573, %v1859
      %v1959 = vadd.f32 %v1576, %v1861
      %v1960 = vadd.f32 %v1581, %v1863
      %v1961 = vadd.f32 %v1584, %v1865
      %v1962 = vadd.f32 %v1589, %v1867
      %v1963 = vadd.f32 %v1592, %v1869
      %v1964 = vadd.f32 %v1597, %v1871
      %v1965 = vadd.f32 %v1600, %v1873
      %v1966 = vadd.f32 %v1605, %v1875
      %v1967 = vadd.f32 %v1608, %v1877
      %v1968 = vadd.f32 %v1613, %v1879
      %v1969 = vadd.f32 %v1616, %v1881
      %v1970 = vadd.f32 %v1621, %v1883
      %v1971 = vadd.f32 %v1624, %v1885
      %v1972 = vadd.f32 %v1629, %v1887
      %v1973 = vadd.f32 %v1632, %v1889
      %v1974 = vadd.f32 %v1637, %v1891
      %v1975 = vadd.f32 %v1640, %v1893
      %v1976 = vadd.f32 %v1645, %v1895
      %v1977 = vadd.f32 %v1648, %v1897
      %v1978 = vadd.f32 %v1653, %v1899
      %v1979 = vadd.f32 %v1656, %v1901
      %v1980 = vadd.f32 %v1661, %v1903
      %v1981 = vadd.f32 %v1664, %v1905
      %v1982 = vadd.f32 %v1669, %v1907
      %v1983 = vadd.f32 %v1672, %v1909
      %v1984 = vadd.f32 %v1677, %v1911
      %v1985 = vadd.f32 %v1680, %v1913
      %v1986 = vrot.slane %v1541, 2
      %v1987 = vrot.slane %v1544, 2
      %v1988 = vsel %vm954, %v1986, %v1987
      %v1989 = vrot.slane %v1549, 2
      %v1990 = vsel %vm954, %v1987, %v1989
      %v1991 = vrot.slane %v1552, 2
      %v1992 = vsel %vm954, %v1989, %v1991
      %v1993 = vrot.slane %v1557, 2
      %v1994 = vsel %vm954, %v1991, %v1993
      %v1995 = vrot.slane %v1560, 2
      %v1996 = vsel %vm954, %v1993, %v1995
      %v1997 = vrot.slane %v1565, 2
      %v1998 = vsel %vm954, %v1995, %v1997
      %v1999 = vrot.slane %v1568, 2
      %v2000 = vsel %vm954, %v1997, %v1999
      %v2001 = vrot.slane %v1573, 2
      %v2002 = vsel %vm954, %v1999, %v2001
      %v2003 = vrot.slane %v1576, 2
      %v2004 = vsel %vm954, %v2001, %v2003
      %v2005 = vrot.slane %v1581, 2
      %v2006 = vsel %vm954, %v2003, %v2005
      %v2007 = vrot.slane %v1584, 2
      %v2008 = vsel %vm954, %v2005, %v2007
      %v2009 = vrot.slane %v1589, 2
      %v2010 = vsel %vm954, %v2007, %v2009
      %v2011 = vrot.slane %v1592, 2
      %v2012 = vsel %vm954, %v2009, %v2011
      %v2013 = vrot.slane %v1597, 2
      %v2014 = vsel %vm954, %v2011, %v2013
      %v2015 = vrot.slane %v1600, 2
      %v2016 = vsel %vm954, %v2013, %v2015
      %v2017 = vrot.slane %v1605, 2
      %v2018 = vsel %vm954, %v2015, %v2017
      %v2019 = vrot.slane %v1608, 2
      %v2020 = vsel %vm954, %v2017, %v2019
      %v2021 = vrot.slane %v1613, 2
      %v2022 = vsel %vm954, %v2019, %v2021
      %v2023 = vrot.slane %v1616, 2
      %v2024 = vsel %vm954, %v2021, %v2023
      %v2025 = vrot.slane %v1621, 2
      %v2026 = vsel %vm954, %v2023, %v2025
      %v2027 = vrot.slane %v1624, 2
      %v2028 = vsel %vm954, %v2025, %v2027
      %v2029 = vrot.slane %v1629, 2
      %v2030 = vsel %vm954, %v2027, %v2029
      %v2031 = vrot.slane %v1632, 2
      %v2032 = vsel %vm954, %v2029, %v2031
      %v2033 = vrot.slane %v1637, 2
      %v2034 = vsel %vm954, %v2031, %v2033
      %v2035 = vrot.slane %v1640, 2
      %v2036 = vsel %vm954, %v2033, %v2035
      %v2037 = vrot.slane %v1645, 2
      %v2038 = vsel %vm954, %v2035, %v2037
      %v2039 = vrot.slane %v1648, 2
      %v2040 = vsel %vm954, %v2037, %v2039
      %v2041 = vrot.slane %v1653, 2
      %v2042 = vsel %vm954, %v2039, %v2041
      %v2043 = vrot.slane %v1656, 2
      %v2044 = vsel %vm954, %v2041, %v2043
      %v2045 = vrot.slane %v1661, 2
      %v2046 = vsel %vm954, %v2043, %v2045
      %v2047 = vrot.slane %v1664, 2
      %v2048 = vsel %vm954, %v2045, %v2047
      %v2049 = vrot.slane %v1669, 2
      %v2050 = vsel %vm954, %v2047, %v2049
      %v2051 = vrot.slane %v1672, 2
      %v2052 = vsel %vm954, %v2049, %v2051
      %v2053 = vrot.slane %v1677, 2
      %v2054 = vsel %vm954, %v2051, %v2053
      %v2055 = vrot.slane %v1680, 2
      %v2056 = vsel %vm954, %v2053, %v2055
      %v2057 = vrot.slane %v1685, 2
      %v2058 = vsel %vm954, %v2055, %v2057
      %2059 = vrot.lane.b32.xlu0 %v1988, 84
      %v2060 = vpop.permute.xlu0 %2059
      %2061 = vrot.lane.b32.xlu0 %v1990, 84
      %v2062 = vpop.permute.xlu0 %2061
      %2063 = vrot.lane.b32.xlu0 %v1992, 84
      %v2064 = vpop.permute.xlu0 %2063
      %2065 = vrot.lane.b32.xlu0 %v1994, 84
      %v2066 = vpop.permute.xlu0 %2065
      %2067 = vrot.lane.b32.xlu0 %v1996, 84
      %v2068 = vpop.permute.xlu0 %2067
      %2069 = vrot.lane.b32.xlu0 %v1998, 84
      %v2070 = vpop.permute.xlu0 %2069
      %2071 = vrot.lane.b32.xlu0 %v2000, 84
      %v2072 = vpop.permute.xlu0 %2071
      %2073 = vrot.lane.b32.xlu0 %v2002, 84
      %v2074 = vpop.permute.xlu0 %2073
      %2075 = vrot.lane.b32.xlu0 %v2004, 84
      %v2076 = vpop.permute.xlu0 %2075
      %2077 = vrot.lane.b32.xlu0 %v2006, 84
      %v2078 = vpop.permute.xlu0 %2077
      %2079 = vrot.lane.b32.xlu0 %v2008, 84
      %v2080 = vpop.permute.xlu0 %2079
      %2081 = vrot.lane.b32.xlu0 %v2010, 84
      %v2082 = vpop.permute.xlu0 %2081
      %2083 = vrot.lane.b32.xlu0 %v2012, 84
      %v2084 = vpop.permute.xlu0 %2083
      %2085 = vrot.lane.b32.xlu0 %v2014, 84
      %v2086 = vpop.permute.xlu0 %2085
      %2087 = vrot.lane.b32.xlu0 %v2016, 84
      %v2088 = vpop.permute.xlu0 %2087
      %2089 = vrot.lane.b32.xlu0 %v2018, 84
      %v2090 = vpop.permute.xlu0 %2089
      %2091 = vrot.lane.b32.xlu0 %v2020, 84
      %v2092 = vpop.permute.xlu0 %2091
      %2093 = vrot.lane.b32.xlu0 %v2022, 84
      %v2094 = vpop.permute.xlu0 %2093
      %2095 = vrot.lane.b32.xlu0 %v2024, 84
      %v2096 = vpop.permute.xlu0 %2095
      %2097 = vrot.lane.b32.xlu0 %v2026, 84
      %v2098 = vpop.permute.xlu0 %2097
      %2099 = vrot.lane.b32.xlu0 %v2028, 84
      %v2100 = vpop.permute.xlu0 %2099
      %2101 = vrot.lane.b32.xlu0 %v2030, 84
      %v2102 = vpop.permute.xlu0 %2101
      %2103 = vrot.lane.b32.xlu0 %v2032, 84
      %v2104 = vpop.permute.xlu0 %2103
      %2105 = vrot.lane.b32.xlu0 %v2034, 84
      %v2106 = vpop.permute.xlu0 %2105
      %2107 = vrot.lane.b32.xlu0 %v2036, 84
      %v2108 = vpop.permute.xlu0 %2107
      %2109 = vrot.lane.b32.xlu0 %v2038, 84
      %v2110 = vpop.permute.xlu0 %2109
      %2111 = vrot.lane.b32.xlu0 %v2040, 84
      %v2112 = vpop.permute.xlu0 %2111
      %2113 = vrot.lane.b32.xlu0 %v2042, 84
      %v2114 = vpop.permute.xlu0 %2113
      %2115 = vrot.lane.b32.xlu0 %v2044, 84
      %v2116 = vpop.permute.xlu0 %2115
      %2117 = vrot.lane.b32.xlu0 %v2046, 84
      %v2118 = vpop.permute.xlu0 %2117
      %2119 = vrot.lane.b32.xlu0 %v2048, 84
      %v2120 = vpop.permute.xlu0 %2119
      %2121 = vrot.lane.b32.xlu0 %v2050, 84
      %v2122 = vpop.permute.xlu0 %2121
      %2123 = vrot.lane.b32.xlu0 %v2052, 84
      %v2124 = vpop.permute.xlu0 %2123
      %2125 = vrot.lane.b32.xlu0 %v2054, 84
      %v2126 = vpop.permute.xlu0 %2125
      %2127 = vrot.lane.b32.xlu0 %v2056, 84
      %v2128 = vpop.permute.xlu0 %2127
      %2129 = vrot.lane.b32.xlu0 %v2058, 84
      %v2130 = vpop.permute.xlu0 %2129
      %v2167 = vadd.f32 %v1950, %v2060
      %v2168 = vadd.f32 %v1951, %v2062
      %v2169 = vadd.f32 %v1952, %v2064
      %v2170 = vadd.f32 %v1953, %v2066
      %v2171 = vadd.f32 %v1954, %v2068
      %v2172 = vadd.f32 %v1955, %v2070
      %v2173 = vadd.f32 %v1956, %v2072
      %v2174 = vadd.f32 %v1957, %v2074
      %v2175 = vadd.f32 %v1958, %v2076
      %v2176 = vadd.f32 %v1959, %v2078
      %v2177 = vadd.f32 %v1960, %v2080
      %v2178 = vadd.f32 %v1961, %v2082
      %v2179 = vadd.f32 %v1962, %v2084
      %v2180 = vadd.f32 %v1963, %v2086
      %v2181 = vadd.f32 %v1964, %v2088
      %v2182 = vadd.f32 %v1965, %v2090
      %v2183 = vadd.f32 %v1966, %v2092
      %v2184 = vadd.f32 %v1967, %v2094
      %v2185 = vadd.f32 %v1968, %v2096
      %v2186 = vadd.f32 %v1969, %v2098
      %v2187 = vadd.f32 %v1970, %v2100
      %v2188 = vadd.f32 %v1971, %v2102
      %v2189 = vadd.f32 %v1972, %v2104
      %v2190 = vadd.f32 %v1973, %v2106
      %v2191 = vadd.f32 %v1974, %v2108
      %v2192 = vadd.f32 %v1975, %v2110
      %v2193 = vadd.f32 %v1976, %v2112
      %v2194 = vadd.f32 %v1977, %v2114
      %v2195 = vadd.f32 %v1978, %v2116
      %v2196 = vadd.f32 %v1979, %v2118
      %v2197 = vadd.f32 %v1980, %v2120
      %v2198 = vadd.f32 %v1981, %v2122
      %v2199 = vadd.f32 %v1982, %v2124
      %v2200 = vadd.f32 %v1983, %v2126
      %v2201 = vadd.f32 %v1984, %v2128
      %v2202 = vadd.f32 %v1985, %v2130
      %v2203 = vadd.f32 %v1696, %v2167
      %v2204 = vadd.f32 %v1697, %v2168
      %v2205 = vadd.f32 %v1698, %v2169
      %v2206 = vadd.f32 %v1699, %v2170
      %v2207 = vadd.f32 %v1700, %v2171
      %v2208 = vadd.f32 %v1701, %v2172
      %v2209 = vadd.f32 %v1702, %v2173
      %v2210 = vadd.f32 %v1703, %v2174
      %v2211 = vadd.f32 %v1704, %v2175
      %v2212 = vadd.f32 %v1705, %v2176
      %v2213 = vadd.f32 %v1706, %v2177
      %v2214 = vadd.f32 %v1707, %v2178
      %v2215 = vadd.f32 %v1708, %v2179
      %v2216 = vadd.f32 %v1709, %v2180
      %v2217 = vadd.f32 %v1710, %v2181
      %v2218 = vadd.f32 %v1711, %v2182
      %v2219 = vadd.f32 %v1712, %v2183
      %v2220 = vadd.f32 %v1713, %v2184
      %v2221 = vadd.f32 %v1714, %v2185
      %v2222 = vadd.f32 %v1715, %v2186
      %v2223 = vadd.f32 %v1716, %v2187
      %v2224 = vadd.f32 %v1717, %v2188
      %v2225 = vadd.f32 %v1718, %v2189
      %v2226 = vadd.f32 %v1719, %v2190
      %v2227 = vadd.f32 %v1720, %v2191
      %v2228 = vadd.f32 %v1721, %v2192
      %v2229 = vadd.f32 %v1722, %v2193
      %v2230 = vadd.f32 %v1723, %v2194
      %v2231 = vadd.f32 %v1724, %v2195
      %v2232 = vadd.f32 %v1725, %v2196
      %v2233 = vadd.f32 %v1726, %v2197
      %v2234 = vadd.f32 %v1727, %v2198
      %v2235 = vadd.f32 %v1728, %v2199
      %v2236 = vadd.f32 %v1729, %v2200
      %v2237 = vadd.f32 %v1730, %v2201
      %v2238 = vadd.f32 %v1731, %v2202
      %2239 = vst.msk [vmem:[%s206] sm:$0xff] %vm215, %v2203
      %2240 = vst.msk [vmem:[%s206 + $0x8] sm:$0xff] %vm215, %v2204
      %2241 = vst.msk [vmem:[%s206 + $0x10] sm:$0xff] %vm215, %v2205
      %2242 = vst.msk [vmem:[%s206 + $0x18] sm:$0xff] %vm215, %v2206
      %2243 = vst.msk [vmem:[%s206 + $0x20] sm:$0xff] %vm215, %v2207
      %2244 = vst.msk [vmem:[%s206 + $0x28] sm:$0xff] %vm215, %v2208
      %2245 = vst.msk [vmem:[%s206 + $0x30] sm:$0xff] %vm215, %v2209
      %2246 = vst.msk [vmem:[%s206 + $0x38] sm:$0xff] %vm215, %v2210
      %2247 = vst.msk [vmem:[%s206 + $0x40] sm:$0xff] %vm215, %v2211
      %2248 = vst.msk [vmem:[%s206 + $0x48] sm:$0xff] %vm215, %v2212
      %2249 = vst.msk [vmem:[%s206 + $0x50] sm:$0xff] %vm215, %v2213
      %2250 = vst.msk [vmem:[%s206 + $0x58] sm:$0xff] %vm215, %v2214
      %2251 = vst.msk [vmem:[%s206 + $0x60] sm:$0xff] %vm215, %v2215
      %2252 = vst.msk [vmem:[%s206 + $0x68] sm:$0xff] %vm215, %v2216
      %2253 = vst.msk [vmem:[%s206 + $0x70] sm:$0xff] %vm215, %v2217
      %2254 = vst.msk [vmem:[%s206 + $0x78] sm:$0xff] %vm215, %v2218
      %2255 = vst.msk [vmem:[%s206 + $0x80] sm:$0xff] %vm215, %v2219
      %2256 = vst.msk [vmem:[%s206 + $0x88] sm:$0xff] %vm215, %v2220
      %2257 = vst.msk [vmem:[%s206 + $0x90] sm:$0xff] %vm215, %v2221
      %2258 = vst.msk [vmem:[%s206 + $0x98] sm:$0xff] %vm215, %v2222
      %2259 = vst.msk [vmem:[%s206 + $0xa0] sm:$0xff] %vm215, %v2223
      %2260 = vst.msk [vmem:[%s206 + $0xa8] sm:$0xff] %vm215, %v2224
      %2261 = vst.msk [vmem:[%s206 + $0xb0] sm:$0xff] %vm215, %v2225
      %2262 = vst.msk [vmem:[%s206 + $0xb8] sm:$0xff] %vm215, %v2226
      %2263 = vst.msk [vmem:[%s206 + $0xc0] sm:$0xff] %vm215, %v2227
      %2264 = vst.msk [vmem:[%s206 + $0xc8] sm:$0xff] %vm215, %v2228
      %2265 = vst.msk [vmem:[%s206 + $0xd0] sm:$0xff] %vm215, %v2229
      %2266 = vst.msk [vmem:[%s206 + $0xd8] sm:$0xff] %vm215, %v2230
      %2267 = vst.msk [vmem:[%s206 + $0xe0] sm:$0xff] %vm215, %v2231
      %2268 = vst.msk [vmem:[%s206 + $0xe8] sm:$0xff] %vm215, %v2232
      %2269 = vst.msk [vmem:[%s206 + $0xf0] sm:$0xff] %vm215, %v2233
      %2270 = vst.msk [vmem:[%s206 + $0xf8] sm:$0xff] %vm215, %v2234
      %2271 = vst.msk [vmem:[%s206 + $0x100] sm:$0xff] %vm215, %v2235
      %2272 = vst.msk [vmem:[%s206 + $0x108] sm:$0xff] %vm215, %v2236
      %2273 = vst.msk [vmem:[%s206 + $0x110] sm:$0xff] %vm215, %v2237
      %2274 = vst.msk [vmem:[%s206 + $0x118] sm:$0xff] %vm215, %v2238
      %v2275 = vld [vmem:[%s197 + $0x10] sm:$0xc]
      %v2276 = vld [vmem:[%s197 + $0x14] sm:$0xf]
      %v2277 = vld [vmem:[%s197 + $0x18] sm:$0xf]
      %v2278 = vld [vmem:[%s197 + $0x1c] sm:$0xf]
      %v2279 = vld [vmem:[%s197 + $0x20] sm:$0xf]
      %v2280 = vld [vmem:[%s197 + $0x24] sm:$0xf]
      %v2281 = vld [vmem:[%s197 + $0x28] sm:$0xf]
      %v2282 = vld [vmem:[%s197 + $0x2c] sm:$0xf]
      %v2283 = vld [vmem:[%s197 + $0x30] sm:$0xf]
      %v2284 = vld [vmem:[%s197 + $0x34] sm:$0xf]
      %v2285 = vld [vmem:[%s197 + $0x38] sm:$0xf]
      %v2286 = vld [vmem:[%s197 + $0x3c] sm:$0xf]
      %v2287 = vld [vmem:[%s197 + $0x40] sm:$0xf]
      %v2288 = vld [vmem:[%s197 + $0x44] sm:$0xf]
      %v2289 = vld [vmem:[%s197 + $0x48] sm:$0xf]
      %v2290 = vld [vmem:[%s197 + $0x4c] sm:$0xf]
      %v2291 = vld [vmem:[%s197 + $0x50] sm:$0xf]
      %v2292 = vld [vmem:[%s197 + $0x54] sm:$0xf]
      %v2293 = vld [vmem:[%s197 + $0x58] sm:$0xf]
      %v2294 = vld [vmem:[%s197 + $0x5c] sm:$0xf]
      %v2295 = vld [vmem:[%s197 + $0x60] sm:$0xf]
      %v2296 = vld [vmem:[%s197 + $0x64] sm:$0xf]
      %v2297 = vld [vmem:[%s197 + $0x68] sm:$0xf]
      %v2298 = vld [vmem:[%s197 + $0x6c] sm:$0xf]
      %v2299 = vld [vmem:[%s197 + $0x70] sm:$0xf]
      %v2300 = vld [vmem:[%s197 + $0x74] sm:$0xf]
      %v2301 = vld [vmem:[%s197 + $0x78] sm:$0xf]
      %v2302 = vld [vmem:[%s197 + $0x7c] sm:$0xf]
      %v2303 = vld [vmem:[%s197 + $0x80] sm:$0xf]
      %v2304 = vld [vmem:[%s197 + $0x84] sm:$0xf]
      %v2305 = vld [vmem:[%s197 + $0x88] sm:$0xf]
      %v2306 = vld [vmem:[%s197 + $0x8c] sm:$0xf]
      %v2307 = vld [vmem:[%s197 + $0x90] sm:$0xf]
      %v2308 = vld [vmem:[%s197 + $0x94] sm:$0xf]
      %v2309 = vld [vmem:[%s197 + $0x98] sm:$0xf]
      %v2310 = vld [vmem:[%s197 + $0x9c] sm:$0xf]
      %v2311 = vld [vmem:[%s197 + $0xa0] sm:$0xf]
      %v2312 = vld [vmem:[%s197 + $0xa4] sm:$0xf]
      %v2313 = vld [vmem:[%s197 + $0xa8] sm:$0x7]
      %s2314 = scalar_lea.vmem %s1, 128
      %v2315 = vld [vmem:[%s2314] sm:$0xf]
      %v2316 = vld [vmem:[%s2314 + $0x4] sm:$0xf]
      %v2317 = vld [vmem:[%s2314 + $0x8] sm:$0xf]
      %v2318 = vld [vmem:[%s2314 + $0xc] sm:$0xf]
      %v2319 = vld [vmem:[%s2314 + $0x10] sm:$0xf]
      %v2320 = vld [vmem:[%s2314 + $0x14] sm:$0xf]
      %v2321 = vld [vmem:[%s2314 + $0x18] sm:$0xf]
      %v2322 = vld [vmem:[%s2314 + $0x1c] sm:$0xf]
      %v2323 = vld [vmem:[%s2314 + $0x20] sm:$0xf]
      %v2324 = vld [vmem:[%s2314 + $0x24] sm:$0xf]
      %v2325 = vld [vmem:[%s2314 + $0x28] sm:$0xf]
      %v2326 = vld [vmem:[%s2314 + $0x2c] sm:$0xf]
      %v2327 = vld [vmem:[%s2314 + $0x30] sm:$0xf]
      %v2328 = vld [vmem:[%s2314 + $0x34] sm:$0xf]
      %v2329 = vld [vmem:[%s2314 + $0x38] sm:$0xf]
      %v2330 = vld [vmem:[%s2314 + $0x3c] sm:$0xf]
      %v2370 = vunpack.c.l.b16 %v2275
      %v2371 = vunpack.c.l.b16 %v2276
      %v2372 = vunpack.c.l.b16 %v2277
      %v2373 = vunpack.c.l.b16 %v2278
      %v2374 = vunpack.c.l.b16 %v2279
      %v2375 = vunpack.c.l.b16 %v2280
      %v2376 = vunpack.c.l.b16 %v2281
      %v2377 = vunpack.c.l.b16 %v2282
      %v2378 = vunpack.c.l.b16 %v2283
      %v2379 = vunpack.c.l.b16 %v2284
      %v2380 = vunpack.c.l.b16 %v2285
      %v2381 = vunpack.c.l.b16 %v2286
      %v2382 = vunpack.c.l.b16 %v2287
      %v2383 = vunpack.c.l.b16 %v2288
      %v2384 = vunpack.c.l.b16 %v2289
      %v2385 = vunpack.c.l.b16 %v2290
      %v2386 = vunpack.c.l.b16 %v2291
      %v2387 = vunpack.c.l.b16 %v2292
      %v2388 = vunpack.c.l.b16 %v2293
      %v2389 = vunpack.c.l.b16 %v2294
      %v2390 = vunpack.c.l.b16 %v2295
      %v2391 = vunpack.c.l.b16 %v2296
      %v2392 = vunpack.c.l.b16 %v2297
      %v2393 = vunpack.c.l.b16 %v2298
      %v2394 = vunpack.c.l.b16 %v2299
      %v2395 = vunpack.c.l.b16 %v2300
      %v2396 = vunpack.c.l.b16 %v2301
      %v2397 = vunpack.c.l.b16 %v2302
      %v2398 = vunpack.c.l.b16 %v2303
      %v2399 = vunpack.c.l.b16 %v2304
      %v2400 = vunpack.c.l.b16 %v2305
      %v2401 = vunpack.c.l.b16 %v2306
      %v2402 = vunpack.c.l.b16 %v2307
      %v2403 = vunpack.c.l.b16 %v2308
      %v2404 = vunpack.c.l.b16 %v2309
      %v2405 = vunpack.c.l.b16 %v2310
      %v2406 = vunpack.c.l.b16 %v2311
      %v2407 = vunpack.c.l.b16 %v2312
      %v2408 = vunpack.c.l.b16 %v2313
      %v2409 = vpack.c.b16 %v2371, %v2370
      %v2410 = vpack.c.b16 %v2373, %v2372
      %v2411 = vpack.c.b16 %v2375, %v2374
      %v2412 = vpack.c.b16 %v2377, %v2376
      %v2413 = vpack.c.b16 %v2379, %v2378
      %v2414 = vpack.c.b16 %v2381, %v2380
      %v2415 = vpack.c.b16 %v2383, %v2382
      %v2416 = vpack.c.b16 %v2385, %v2384
      %v2417 = vpack.c.b16 %v2387, %v2386
      %v2418 = vpack.c.b16 %v2389, %v2388
      %v2419 = vpack.c.b16 %v2391, %v2390
      %v2420 = vpack.c.b16 %v2393, %v2392
      %v2421 = vpack.c.b16 %v2395, %v2394
      %v2422 = vpack.c.b16 %v2397, %v2396
      %v2423 = vpack.c.b16 %v2399, %v2398
      %v2424 = vpack.c.b16 %v2401, %v2400
      %v2425 = vpack.c.b16 %v2403, %v2402
      %v2426 = vpack.c.b16 %v2405, %v2404
      %v2427 = vpack.c.b16 %v2407, %v2406
      %v2428 = vpack.c.b16 %v2408, %v2408
      %vm2429 = vcmask 1045504
      %v2430 = vrot.slane %v2409, 2
      %v2431 = vrot.slane %v2410, 2
      %v2432 = vsel %vm2429, %v2430, %v2431
      %v2433 = vrot.slane %v2411, 2
      %v2434 = vsel %vm2429, %v2431, %v2433
      %v2435 = vrot.slane %v2412, 2
      %v2436 = vsel %vm2429, %v2433, %v2435
      %v2437 = vrot.slane %v2413, 2
      %v2438 = vsel %vm2429, %v2435, %v2437
      %v2439 = vrot.slane %v2414, 2
      %v2440 = vsel %vm2429, %v2437, %v2439
      %v2441 = vrot.slane %v2415, 2
      %v2442 = vsel %vm2429, %v2439, %v2441
      %v2443 = vrot.slane %v2416, 2
      %v2444 = vsel %vm2429, %v2441, %v2443
      %v2445 = vrot.slane %v2417, 2
      %v2446 = vsel %vm2429, %v2443, %v2445
      %v2447 = vrot.slane %v2418, 2
      %v2448 = vsel %vm2429, %v2445, %v2447
      %v2449 = vrot.slane %v2419, 2
      %v2450 = vsel %vm2429, %v2447, %v2449
      %v2451 = vrot.slane %v2420, 2
      %v2452 = vsel %vm2429, %v2449, %v2451
      %v2453 = vrot.slane %v2421, 2
      %v2454 = vsel %vm2429, %v2451, %v2453
      %v2455 = vrot.slane %v2422, 2
      %v2456 = vsel %vm2429, %v2453, %v2455
      %v2457 = vrot.slane %v2423, 2
      %v2458 = vsel %vm2429, %v2455, %v2457
      %v2459 = vrot.slane %v2424, 2
      %v2460 = vsel %vm2429, %v2457, %v2459
      %v2461 = vrot.slane %v2425, 2
      %v2462 = vsel %vm2429, %v2459, %v2461
      %v2463 = vrot.slane %v2426, 2
      %v2464 = vsel %vm2429, %v2461, %v2463
      %v2465 = vrot.slane %v2427, 2
      %v2466 = vsel %vm2429, %v2463, %v2465
      %v2467 = vrot.slane %v2428, 2
      %v2468 = vsel %vm2429, %v2465, %v2467
      %v2505 = vunpack.c.l.b16 %v2315
      %v2506 = vunpack.c.l.b16 %v2316
      %v2507 = vunpack.c.l.b16 %v2317
      %v2508 = vunpack.c.l.b16 %v2318
      %v2509 = vunpack.c.l.b16 %v2319
      %v2510 = vunpack.c.l.b16 %v2320
      %v2511 = vunpack.c.l.b16 %v2321
      %v2512 = vunpack.c.l.b16 %v2322
      %v2513 = vunpack.c.l.b16 %v2323
      %v2514 = vunpack.c.l.b16 %v2324
      %v2515 = vunpack.c.l.b16 %v2325
      %v2516 = vunpack.c.l.b16 %v2326
      %v2517 = vunpack.c.l.b16 %v2327
      %v2518 = vunpack.c.l.b16 %v2328
      %v2519 = vunpack.c.l.b16 %v2329
      %v2520 = vunpack.c.l.b16 %v2330
      %v2521 = vpack.c.b16 %v2506, %v2505
      %v2522 = vpack.c.b16 %v2508, %v2507
      %v2523 = vpack.c.b16 %v2510, %v2509
      %v2524 = vpack.c.b16 %v2512, %v2511
      %v2525 = vpack.c.b16 %v2514, %v2513
      %v2526 = vpack.c.b16 %v2516, %v2515
      %v2527 = vpack.c.b16 %v2518, %v2517
      %v2528 = vpack.c.b16 %v2520, %v2519
      %2537 = vmatprep.subr.bf16.mxu0 0
      %2538 = vmatpush1.bf16.msra.mxu0 %v2521
      %2539 = vmatprep.subr.bf16.mxu0 0
      %2540 = vmatpush1.bf16.msra.mxu0 %v2522
      %2541 = vmatprep.subr.bf16.mxu0 0
      %2542 = vmatpush1.bf16.msra.mxu0 %v2523
      %2543 = vmatprep.subr.bf16.mxu0 0
      %2544 = vmatpush1.bf16.msra.mxu0 %v2524
      %2545 = vmatprep.subr.bf16.mxu0 0
      %2546 = vmatpush1.bf16.msra.mxu0 %v2525
      %2547 = vmatprep.subr.bf16.mxu0 0
      %2548 = vmatpush1.bf16.msra.mxu0 %v2526
      %2549 = vmatprep.subr.bf16.mxu0 0
      %2550 = vmatpush1.bf16.msra.mxu0 %v2527
      %2551 = vmatprep.subr.bf16.mxu0 0
      %2552 = vmatpush1.bf16.msra.mxu0 %v2528
      %2553 = vmatprep.subr.bf16.mxu0 0
      %2554 = vmatpush1.bf16.msra.mxu0 0
      %2555 = vmatprep.subr.bf16.mxu0 0
      %2556 = vmatpush1.bf16.msra.mxu0 0
      %2557 = vmatprep.subr.bf16.mxu0 0
      %2558 = vmatpush1.bf16.msra.mxu0 0
      %2559 = vmatprep.subr.bf16.mxu0 0
      %2560 = vmatpush1.bf16.msra.mxu0 0
      %2561 = vmatprep.subr.bf16.mxu0 0
      %2562 = vmatpush1.bf16.msra.mxu0 0
      %2563 = vmatprep.subr.bf16.mxu0 0
      %2564 = vmatpush1.bf16.msra.mxu0 0
      %2565 = vmatprep.subr.bf16.mxu0 0
      %2566 = vmatpush1.bf16.msra.mxu0 0
      %2567 = vmatprep.subr.bf16.mxu0 0
      %2568 = vmatpush1.bf16.msra.mxu0 0
      %2569 = vmatprep.mubr.bf16.mxu0 0
      %2570 = vmatmul.mubr.bf16.gmra.mrb[0].mxu0 %v2432
      %v2571 = vpop.f32.mrb[0].mxu0
      %v2572 = vadd.f32 0.0, %v2571
      %v2573 = vpop.f32.mrb[0].mxu0
      %v2574 = vpop.f32.mrb[0].mxu0
      %v2575 = vadd.f32 0.0, %v2574
      %v2576 = vpop.f32.mrb[0].mxu0
      %2577 = vmatprep.mubr.bf16.mxu0 0
      %2578 = vmatmul.mubr.bf16.gmra.mrb[0].mxu0 %v2434
      %v2579 = vpop.f32.mrb[0].mxu0
      %v2580 = vadd.f32 0.0, %v2579
      %v2581 = vpop.f32.mrb[0].mxu0
      %v2582 = vpop.f32.mrb[0].mxu0
      %v2583 = vadd.f32 0.0, %v2582
      %v2584 = vpop.f32.mrb[0].mxu0
      %2585 = vmatprep.mubr.bf16.mxu0 0
      %2586 = vmatmul.mubr.bf16.gmra.mrb[0].mxu0 %v2436
      %v2587 = vpop.f32.mrb[0].mxu0
      %v2588 = vadd.f32 0.0, %v2587
      %v2589 = vpop.f32.mrb[0].mxu0
      %v2590 = vpop.f32.mrb[0].mxu0
      %v2591 = vadd.f32 0.0, %v2590
      %v2592 = vpop.f32.mrb[0].mxu0
      %2593 = vmatprep.mubr.bf16.mxu0 0
      %2594 = vmatmul.mubr.bf16.gmra.mrb[0].mxu0 %v2438
      %v2595 = vpop.f32.mrb[0].mxu0
      %v2596 = vadd.f32 0.0, %v2595
      %v2597 = vpop.f32.mrb[0].mxu0
      %v2598 = vpop.f32.mrb[0].mxu0
      %v2599 = vadd.f32 0.0, %v2598
      %v2600 = vpop.f32.mrb[0].mxu0
      %2601 = vmatprep.mubr.bf16.mxu0 0
      %2602 = vmatmul.mubr.bf16.gmra.mrb[0].mxu0 %v2440
      %v2603 = vpop.f32.mrb[0].mxu0
      %v2604 = vadd.f32 0.0, %v2603
      %v2605 = vpop.f32.mrb[0].mxu0
      %v2606 = vpop.f32.mrb[0].mxu0
      %v2607 = vadd.f32 0.0, %v2606
      %v2608 = vpop.f32.mrb[0].mxu0
      %2609 = vmatprep.mubr.bf16.mxu0 0
      %2610 = vmatmul.mubr.bf16.gmra.mrb[0].mxu0 %v2442
      %v2611 = vpop.f32.mrb[0].mxu0
      %v2612 = vadd.f32 0.0, %v2611
      %v2613 = vpop.f32.mrb[0].mxu0
      %v2614 = vpop.f32.mrb[0].mxu0
      %v2615 = vadd.f32 0.0, %v2614
      %v2616 = vpop.f32.mrb[0].mxu0
      %2617 = vmatprep.mubr.bf16.mxu0 0
      %2618 = vmatmul.mubr.bf16.gmra.mrb[0].mxu0 %v2444
      %v2619 = vpop.f32.mrb[0].mxu0
      %v2620 = vadd.f32 0.0, %v2619
      %v2621 = vpop.f32.mrb[0].mxu0
      %v2622 = vpop.f32.mrb[0].mxu0
      %v2623 = vadd.f32 0.0, %v2622
      %v2624 = vpop.f32.mrb[0].mxu0
      %2625 = vmatprep.mubr.bf16.mxu0 0
      %2626 = vmatmul.mubr.bf16.gmra.mrb[0].mxu0 %v2446
      %v2627 = vpop.f32.mrb[0].mxu0
      %v2628 = vadd.f32 0.0, %v2627
      %v2629 = vpop.f32.mrb[0].mxu0
      %v2630 = vpop.f32.mrb[0].mxu0
      %v2631 = vadd.f32 0.0, %v2630
      %v2632 = vpop.f32.mrb[0].mxu0
      %2633 = vmatprep.mubr.bf16.mxu0 0
      %2634 = vmatmul.mubr.bf16.gmra.mrb[0].mxu0 %v2448
      %v2635 = vpop.f32.mrb[0].mxu0
      %v2636 = vadd.f32 0.0, %v2635
      %v2637 = vpop.f32.mrb[0].mxu0
      %v2638 = vpop.f32.mrb[0].mxu0
      %v2639 = vadd.f32 0.0, %v2638
      %v2640 = vpop.f32.mrb[0].mxu0
      %2641 = vmatprep.mubr.bf16.mxu0 0
      %2642 = vmatmul.mubr.bf16.gmra.mrb[0].mxu0 %v2450
      %v2643 = vpop.f32.mrb[0].mxu0
      %v2644 = vadd.f32 0.0, %v2643
      %v2645 = vpop.f32.mrb[0].mxu0
      %v2646 = vpop.f32.mrb[0].mxu0
      %v2647 = vadd.f32 0.0, %v2646
      %v2648 = vpop.f32.mrb[0].mxu0
      %2649 = vmatprep.mubr.bf16.mxu0 0
      %2650 = vmatmul.mubr.bf16.gmra.mrb[0].mxu0 %v2452
      %v2651 = vpop.f32.mrb[0].mxu0
      %v2652 = vadd.f32 0.0, %v2651
      %v2653 = vpop.f32.mrb[0].mxu0
      %v2654 = vpop.f32.mrb[0].mxu0
      %v2655 = vadd.f32 0.0, %v2654
      %v2656 = vpop.f32.mrb[0].mxu0
      %2657 = vmatprep.mubr.bf16.mxu0 0
      %2658 = vmatmul.mubr.bf16.gmra.mrb[0].mxu0 %v2454
      %v2659 = vpop.f32.mrb[0].mxu0
      %v2660 = vadd.f32 0.0, %v2659
      %v2661 = vpop.f32.mrb[0].mxu0
      %v2662 = vpop.f32.mrb[0].mxu0
      %v2663 = vadd.f32 0.0, %v2662
      %v2664 = vpop.f32.mrb[0].mxu0
      %2665 = vmatprep.mubr.bf16.mxu0 0
      %2666 = vmatmul.mubr.bf16.gmra.mrb[0].mxu0 %v2456
      %v2667 = vpop.f32.mrb[0].mxu0
      %v2668 = vadd.f32 0.0, %v2667
      %v2669 = vpop.f32.mrb[0].mxu0
      %v2670 = vpop.f32.mrb[0].mxu0
      %v2671 = vadd.f32 0.0, %v2670
      %v2672 = vpop.f32.mrb[0].mxu0
      %2673 = vmatprep.mubr.bf16.mxu0 0
      %2674 = vmatmul.mubr.bf16.gmra.mrb[0].mxu0 %v2458
      %v2675 = vpop.f32.mrb[0].mxu0
      %v2676 = vadd.f32 0.0, %v2675
      %v2677 = vpop.f32.mrb[0].mxu0
      %v2678 = vpop.f32.mrb[0].mxu0
      %v2679 = vadd.f32 0.0, %v2678
      %v2680 = vpop.f32.mrb[0].mxu0
      %2681 = vmatprep.mubr.bf16.mxu0 0
      %2682 = vmatmul.mubr.bf16.gmra.mrb[0].mxu0 %v2460
      %v2683 = vpop.f32.mrb[0].mxu0
      %v2684 = vadd.f32 0.0, %v2683
      %v2685 = vpop.f32.mrb[0].mxu0
      %v2686 = vpop.f32.mrb[0].mxu0
      %v2687 = vadd.f32 0.0, %v2686
      %v2688 = vpop.f32.mrb[0].mxu0
      %2689 = vmatprep.mubr.bf16.mxu0 0
      %2690 = vmatmul.mubr.bf16.gmra.mrb[0].mxu0 %v2462
      %v2691 = vpop.f32.mrb[0].mxu0
      %v2692 = vadd.f32 0.0, %v2691
      %v2693 = vpop.f32.mrb[0].mxu0
      %v2694 = vpop.f32.mrb[0].mxu0
      %v2695 = vadd.f32 0.0, %v2694
      %v2696 = vpop.f32.mrb[0].mxu0
      %2697 = vmatprep.mubr.bf16.mxu0 0
      %2698 = vmatmul.mubr.bf16.gmra.mrb[0].mxu0 %v2464
      %v2699 = vpop.f32.mrb[0].mxu0
      %v2700 = vadd.f32 0.0, %v2699
      %v2701 = vpop.f32.mrb[0].mxu0
      %v2702 = vpop.f32.mrb[0].mxu0
      %v2703 = vadd.f32 0.0, %v2702
      %v2704 = vpop.f32.mrb[0].mxu0
      %2705 = vmatprep.mubr.bf16.mxu0 0
      %2706 = vmatmul.mubr.bf16.gmra.mrb[0].mxu0 %v2466
      %v2707 = vpop.f32.mrb[0].mxu0
      %v2708 = vadd.f32 0.0, %v2707
      %v2709 = vpop.f32.mrb[0].mxu0
      %v2710 = vpop.f32.mrb[0].mxu0
      %v2711 = vadd.f32 0.0, %v2710
      %v2712 = vpop.f32.mrb[0].mxu0
      %2713 = vmatprep.mubr.bf16.mxu0 0
      %2714 = vmatmul.mubr.bf16.gmra.mrb[0].mxu0 %v2468
      %v2715 = vpop.f32.mrb[0].mxu0
      %v2716 = vadd.f32 0.0, %v2715
      %v2717 = vpop.f32.mrb[0].mxu0
      %v2718 = vpop.f32.mrb[0].mxu0
      %v2719 = vpop.f32.mrb[0].mxu0
      %2720 = vmatprep.mubr.bf16.mxu0 0
      %2721 = vmatmul.mubr.bf16.gmra.mrb[0].mxu0 %v2467
      %v2722 = vpop.f32.mrb[0].mxu0
      %v2723 = vpop.f32.mrb[0].mxu0
      %v2724 = vpop.f32.mrb[0].mxu0
      %v2725 = vpop.f32.mrb[0].mxu0
      %2726 = vdwg.mxu0
      %v2727 = vld [vmem:[%s206] sm:$0xff]
      %v2728 = vld [vmem:[%s206 + $0x8] sm:$0xff]
      %v2729 = vld [vmem:[%s206 + $0x10] sm:$0xff]
      %v2730 = vld [vmem:[%s206 + $0x18] sm:$0xff]
      %v2731 = vld [vmem:[%s206 + $0x20] sm:$0xff]
      %v2732 = vld [vmem:[%s206 + $0x28] sm:$0xff]
      %v2733 = vld [vmem:[%s206 + $0x30] sm:$0xff]
      %v2734 = vld [vmem:[%s206 + $0x38] sm:$0xff]
      %v2735 = vld [vmem:[%s206 + $0x40] sm:$0xff]
      %v2736 = vld [vmem:[%s206 + $0x48] sm:$0xff]
      %v2737 = vld [vmem:[%s206 + $0x50] sm:$0xff]
      %v2738 = vld [vmem:[%s206 + $0x58] sm:$0xff]
      %v2739 = vld [vmem:[%s206 + $0x60] sm:$0xff]
      %v2740 = vld [vmem:[%s206 + $0x68] sm:$0xff]
      %v2741 = vld [vmem:[%s206 + $0x70] sm:$0xff]
      %v2742 = vld [vmem:[%s206 + $0x78] sm:$0xff]
      %v2743 = vld [vmem:[%s206 + $0x80] sm:$0xff]
      %v2744 = vld [vmem:[%s206 + $0x88] sm:$0xff]
      %v2745 = vld [vmem:[%s206 + $0x90] sm:$0xff]
      %v2746 = vld [vmem:[%s206 + $0x98] sm:$0xff]
      %v2747 = vld [vmem:[%s206 + $0xa0] sm:$0xff]
      %v2748 = vld [vmem:[%s206 + $0xa8] sm:$0xff]
      %v2749 = vld [vmem:[%s206 + $0xb0] sm:$0xff]
      %v2750 = vld [vmem:[%s206 + $0xb8] sm:$0xff]
      %v2751 = vld [vmem:[%s206 + $0xc0] sm:$0xff]
      %v2752 = vld [vmem:[%s206 + $0xc8] sm:$0xff]
      %v2753 = vld [vmem:[%s206 + $0xd0] sm:$0xff]
      %v2754 = vld [vmem:[%s206 + $0xd8] sm:$0xff]
      %v2755 = vld [vmem:[%s206 + $0xe0] sm:$0xff]
      %v2756 = vld [vmem:[%s206 + $0xe8] sm:$0xff]
      %v2757 = vld [vmem:[%s206 + $0xf0] sm:$0xff]
      %v2758 = vld [vmem:[%s206 + $0xf8] sm:$0xff]
      %v2759 = vld [vmem:[%s206 + $0x100] sm:$0xff]
      %v2760 = vld [vmem:[%s206 + $0x108] sm:$0xff]
      %v2761 = vld [vmem:[%s206 + $0x110] sm:$0xff]
      %v2762 = vld [vmem:[%s206 + $0x118] sm:$0xff]
      %v2800 = vrot.slane %v2572, 1
      %v2801 = vrot.slane %v2575, 1
      %v2802 = vsel %vm736, %v2800, %v2801
      %v2803 = vrot.slane %v2580, 1
      %v2804 = vsel %vm736, %v2801, %v2803
      %v2805 = vrot.slane %v2583, 1
      %v2806 = vsel %vm736, %v2803, %v2805
      %v2807 = vrot.slane %v2588, 1
      %v2808 = vsel %vm736, %v2805, %v2807
      %v2809 = vrot.slane %v2591, 1
      %v2810 = vsel %vm736, %v2807, %v2809
      %v2811 = vrot.slane %v2596, 1
      %v2812 = vsel %vm736, %v2809, %v2811
      %v2813 = vrot.slane %v2599, 1
      %v2814 = vsel %vm736, %v2811, %v2813
      %v2815 = vrot.slane %v2604, 1
      %v2816 = vsel %vm736, %v2813, %v2815
      %v2817 = vrot.slane %v2607, 1
      %v2818 = vsel %vm736, %v2815, %v2817
      %v2819 = vrot.slane %v2612, 1
      %v2820 = vsel %vm736, %v2817, %v2819
      %v2821 = vrot.slane %v2615, 1
      %v2822 = vsel %vm736, %v2819, %v2821
      %v2823 = vrot.slane %v2620, 1
      %v2824 = vsel %vm736, %v2821, %v2823
      %v2825 = vrot.slane %v2623, 1
      %v2826 = vsel %vm736, %v2823, %v2825
      %v2827 = vrot.slane %v2628, 1
      %v2828 = vsel %vm736, %v2825, %v2827
      %v2829 = vrot.slane %v2631, 1
      %v2830 = vsel %vm736, %v2827, %v2829
      %v2831 = vrot.slane %v2636, 1
      %v2832 = vsel %vm736, %v2829, %v2831
      %v2833 = vrot.slane %v2639, 1
      %v2834 = vsel %vm736, %v2831, %v2833
      %v2835 = vrot.slane %v2644, 1
      %v2836 = vsel %vm736, %v2833, %v2835
      %v2837 = vrot.slane %v2647, 1
      %v2838 = vsel %vm736, %v2835, %v2837
      %v2839 = vrot.slane %v2652, 1
      %v2840 = vsel %vm736, %v2837, %v2839
      %v2841 = vrot.slane %v2655, 1
      %v2842 = vsel %vm736, %v2839, %v2841
      %v2843 = vrot.slane %v2660, 1
      %v2844 = vsel %vm736, %v2841, %v2843
      %v2845 = vrot.slane %v2663, 1
      %v2846 = vsel %vm736, %v2843, %v2845
      %v2847 = vrot.slane %v2668, 1
      %v2848 = vsel %vm736, %v2845, %v2847
      %v2849 = vrot.slane %v2671, 1
      %v2850 = vsel %vm736, %v2847, %v2849
      %v2851 = vrot.slane %v2676, 1
      %v2852 = vsel %vm736, %v2849, %v2851
      %v2853 = vrot.slane %v2679, 1
      %v2854 = vsel %vm736, %v2851, %v2853
      %v2855 = vrot.slane %v2684, 1
      %v2856 = vsel %vm736, %v2853, %v2855
      %v2857 = vrot.slane %v2687, 1
      %v2858 = vsel %vm736, %v2855, %v2857
      %v2859 = vrot.slane %v2692, 1
      %v2860 = vsel %vm736, %v2857, %v2859
      %v2861 = vrot.slane %v2695, 1
      %v2862 = vsel %vm736, %v2859, %v2861
      %v2863 = vrot.slane %v2700, 1
      %v2864 = vsel %vm736, %v2861, %v2863
      %v2865 = vrot.slane %v2703, 1
      %v2866 = vsel %vm736, %v2863, %v2865
      %v2867 = vrot.slane %v2708, 1
      %v2868 = vsel %vm736, %v2865, %v2867
      %v2869 = vrot.slane %v2711, 1
      %v2870 = vsel %vm736, %v2867, %v2869
      %v2871 = vrot.slane %v2716, 1
      %v2872 = vsel %vm736, %v2869, %v2871
      %2873 = vrot.lane.b32.xlu0 %v2802, 106
      %v2874 = vpop.permute.xlu0 %2873
      %2875 = vrot.lane.b32.xlu0 %v2804, 106
      %v2876 = vpop.permute.xlu0 %2875
      %2877 = vrot.lane.b32.xlu0 %v2806, 106
      %v2878 = vpop.permute.xlu0 %2877
      %2879 = vrot.lane.b32.xlu0 %v2808, 106
      %v2880 = vpop.permute.xlu0 %2879
      %2881 = vrot.lane.b32.xlu0 %v2810, 106
      %v2882 = vpop.permute.xlu0 %2881
      %2883 = vrot.lane.b32.xlu0 %v2812, 106
      %v2884 = vpop.permute.xlu0 %2883
      %2885 = vrot.lane.b32.xlu0 %v2814, 106
      %v2886 = vpop.permute.xlu0 %2885
      %2887 = vrot.lane.b32.xlu0 %v2816, 106
      %v2888 = vpop.permute.xlu0 %2887
      %2889 = vrot.lane.b32.xlu0 %v2818, 106
      %v2890 = vpop.permute.xlu0 %2889
      %2891 = vrot.lane.b32.xlu0 %v2820, 106
      %v2892 = vpop.permute.xlu0 %2891
      %2893 = vrot.lane.b32.xlu0 %v2822, 106
      %v2894 = vpop.permute.xlu0 %2893
      %2895 = vrot.lane.b32.xlu0 %v2824, 106
      %v2896 = vpop.permute.xlu0 %2895
      %2897 = vrot.lane.b32.xlu0 %v2826, 106
      %v2898 = vpop.permute.xlu0 %2897
      %2899 = vrot.lane.b32.xlu0 %v2828, 106
      %v2900 = vpop.permute.xlu0 %2899
      %2901 = vrot.lane.b32.xlu0 %v2830, 106
      %v2902 = vpop.permute.xlu0 %2901
      %2903 = vrot.lane.b32.xlu0 %v2832, 106
      %v2904 = vpop.permute.xlu0 %2903
      %2905 = vrot.lane.b32.xlu0 %v2834, 106
      %v2906 = vpop.permute.xlu0 %2905
      %2907 = vrot.lane.b32.xlu0 %v2836, 106
      %v2908 = vpop.permute.xlu0 %2907
      %2909 = vrot.lane.b32.xlu0 %v2838, 106
      %v2910 = vpop.permute.xlu0 %2909
      %2911 = vrot.lane.b32.xlu0 %v2840, 106
      %v2912 = vpop.permute.xlu0 %2911
      %2913 = vrot.lane.b32.xlu0 %v2842, 106
      %v2914 = vpop.permute.xlu0 %2913
      %2915 = vrot.lane.b32.xlu0 %v2844, 106
      %v2916 = vpop.permute.xlu0 %2915
      %2917 = vrot.lane.b32.xlu0 %v2846, 106
      %v2918 = vpop.permute.xlu0 %2917
      %2919 = vrot.lane.b32.xlu0 %v2848, 106
      %v2920 = vpop.permute.xlu0 %2919
      %2921 = vrot.lane.b32.xlu0 %v2850, 106
      %v2922 = vpop.permute.xlu0 %2921
      %2923 = vrot.lane.b32.xlu0 %v2852, 106
      %v2924 = vpop.permute.xlu0 %2923
      %2925 = vrot.lane.b32.xlu0 %v2854, 106
      %v2926 = vpop.permute.xlu0 %2925
      %2927 = vrot.lane.b32.xlu0 %v2856, 106
      %v2928 = vpop.permute.xlu0 %2927
      %2929 = vrot.lane.b32.xlu0 %v2858, 106
      %v2930 = vpop.permute.xlu0 %2929
      %2931 = vrot.lane.b32.xlu0 %v2860, 106
      %v2932 = vpop.permute.xlu0 %2931
      %2933 = vrot.lane.b32.xlu0 %v2862, 106
      %v2934 = vpop.permute.xlu0 %2933
      %2935 = vrot.lane.b32.xlu0 %v2864, 106
      %v2936 = vpop.permute.xlu0 %2935
      %2937 = vrot.lane.b32.xlu0 %v2866, 106
      %v2938 = vpop.permute.xlu0 %2937
      %2939 = vrot.lane.b32.xlu0 %v2868, 106
      %v2940 = vpop.permute.xlu0 %2939
      %2941 = vrot.lane.b32.xlu0 %v2870, 106
      %v2942 = vpop.permute.xlu0 %2941
      %2943 = vrot.lane.b32.xlu0 %v2872, 106
      %v2944 = vpop.permute.xlu0 %2943
      %v2981 = vadd.f32 %v2572, %v2874
      %v2982 = vadd.f32 %v2575, %v2876
      %v2983 = vadd.f32 %v2580, %v2878
      %v2984 = vadd.f32 %v2583, %v2880
      %v2985 = vadd.f32 %v2588, %v2882
      %v2986 = vadd.f32 %v2591, %v2884
      %v2987 = vadd.f32 %v2596, %v2886
      %v2988 = vadd.f32 %v2599, %v2888
      %v2989 = vadd.f32 %v2604, %v2890
      %v2990 = vadd.f32 %v2607, %v2892
      %v2991 = vadd.f32 %v2612, %v2894
      %v2992 = vadd.f32 %v2615, %v2896
      %v2993 = vadd.f32 %v2620, %v2898
      %v2994 = vadd.f32 %v2623, %v2900
      %v2995 = vadd.f32 %v2628, %v2902
      %v2996 = vadd.f32 %v2631, %v2904
      %v2997 = vadd.f32 %v2636, %v2906
      %v2998 = vadd.f32 %v2639, %v2908
      %v2999 = vadd.f32 %v2644, %v2910
      %v3000 = vadd.f32 %v2647, %v2912
      %v3001 = vadd.f32 %v2652, %v2914
      %v3002 = vadd.f32 %v2655, %v2916
      %v3003 = vadd.f32 %v2660, %v2918
      %v3004 = vadd.f32 %v2663, %v2920
      %v3005 = vadd.f32 %v2668, %v2922
      %v3006 = vadd.f32 %v2671, %v2924
      %v3007 = vadd.f32 %v2676, %v2926
      %v3008 = vadd.f32 %v2679, %v2928
      %v3009 = vadd.f32 %v2684, %v2930
      %v3010 = vadd.f32 %v2687, %v2932
      %v3011 = vadd.f32 %v2692, %v2934
      %v3012 = vadd.f32 %v2695, %v2936
      %v3013 = vadd.f32 %v2700, %v2938
      %v3014 = vadd.f32 %v2703, %v2940
      %v3015 = vadd.f32 %v2708, %v2942
      %v3016 = vadd.f32 %v2711, %v2944
      %v3017 = vrot.slane %v2572, 2
      %v3018 = vrot.slane %v2575, 2
      %v3019 = vsel %vm954, %v3017, %v3018
      %v3020 = vrot.slane %v2580, 2
      %v3021 = vsel %vm954, %v3018, %v3020
      %v3022 = vrot.slane %v2583, 2
      %v3023 = vsel %vm954, %v3020, %v3022
      %v3024 = vrot.slane %v2588, 2
      %v3025 = vsel %vm954, %v3022, %v3024
      %v3026 = vrot.slane %v2591, 2
      %v3027 = vsel %vm954, %v3024, %v3026
      %v3028 = vrot.slane %v2596, 2
      %v3029 = vsel %vm954, %v3026, %v3028
      %v3030 = vrot.slane %v2599, 2
      %v3031 = vsel %vm954, %v3028, %v3030
      %v3032 = vrot.slane %v2604, 2
      %v3033 = vsel %vm954, %v3030, %v3032
      %v3034 = vrot.slane %v2607, 2
      %v3035 = vsel %vm954, %v3032, %v3034
      %v3036 = vrot.slane %v2612, 2
      %v3037 = vsel %vm954, %v3034, %v3036
      %v3038 = vrot.slane %v2615, 2
      %v3039 = vsel %vm954, %v3036, %v3038
      %v3040 = vrot.slane %v2620, 2
      %v3041 = vsel %vm954, %v3038, %v3040
      %v3042 = vrot.slane %v2623, 2
      %v3043 = vsel %vm954, %v3040, %v3042
      %v3044 = vrot.slane %v2628, 2
      %v3045 = vsel %vm954, %v3042, %v3044
      %v3046 = vrot.slane %v2631, 2
      %v3047 = vsel %vm954, %v3044, %v3046
      %v3048 = vrot.slane %v2636, 2
      %v3049 = vsel %vm954, %v3046, %v3048
      %v3050 = vrot.slane %v2639, 2
      %v3051 = vsel %vm954, %v3048, %v3050
      %v3052 = vrot.slane %v2644, 2
      %v3053 = vsel %vm954, %v3050, %v3052
      %v3054 = vrot.slane %v2647, 2
      %v3055 = vsel %vm954, %v3052, %v3054
      %v3056 = vrot.slane %v2652, 2
      %v3057 = vsel %vm954, %v3054, %v3056
      %v3058 = vrot.slane %v2655, 2
      %v3059 = vsel %vm954, %v3056, %v3058
      %v3060 = vrot.slane %v2660, 2
      %v3061 = vsel %vm954, %v3058, %v3060
      %v3062 = vrot.slane %v2663, 2
      %v3063 = vsel %vm954, %v3060, %v3062
      %v3064 = vrot.slane %v2668, 2
      %v3065 = vsel %vm954, %v3062, %v3064
      %v3066 = vrot.slane %v2671, 2
      %v3067 = vsel %vm954, %v3064, %v3066
      %v3068 = vrot.slane %v2676, 2
      %v3069 = vsel %vm954, %v3066, %v3068
      %v3070 = vrot.slane %v2679, 2
      %v3071 = vsel %vm954, %v3068, %v3070
      %v3072 = vrot.slane %v2684, 2
      %v3073 = vsel %vm954, %v3070, %v3072
      %v3074 = vrot.slane %v2687, 2
      %v3075 = vsel %vm954, %v3072, %v3074
      %v3076 = vrot.slane %v2692, 2
      %v3077 = vsel %vm954, %v3074, %v3076
      %v3078 = vrot.slane %v2695, 2
      %v3079 = vsel %vm954, %v3076, %v3078
      %v3080 = vrot.slane %v2700, 2
      %v3081 = vsel %vm954, %v3078, %v3080
      %v3082 = vrot.slane %v2703, 2
      %v3083 = vsel %vm954, %v3080, %v3082
      %v3084 = vrot.slane %v2708, 2
      %v3085 = vsel %vm954, %v3082, %v3084
      %v3086 = vrot.slane %v2711, 2
      %v3087 = vsel %vm954, %v3084, %v3086
      %v3088 = vrot.slane %v2716, 2
      %v3089 = vsel %vm954, %v3086, %v3088
      %3090 = vrot.lane.b32.xlu0 %v3019, 84
      %v3091 = vpop.permute.xlu0 %3090
      %3092 = vrot.lane.b32.xlu0 %v3021, 84
      %v3093 = vpop.permute.xlu0 %3092
      %3094 = vrot.lane.b32.xlu0 %v3023, 84
      %v3095 = vpop.permute.xlu0 %3094
      %3096 = vrot.lane.b32.xlu0 %v3025, 84
      %v3097 = vpop.permute.xlu0 %3096
      %3098 = vrot.lane.b32.xlu0 %v3027, 84
      %v3099 = vpop.permute.xlu0 %3098
      %3100 = vrot.lane.b32.xlu0 %v3029, 84
      %v3101 = vpop.permute.xlu0 %3100
      %3102 = vrot.lane.b32.xlu0 %v3031, 84
      %v3103 = vpop.permute.xlu0 %3102
      %3104 = vrot.lane.b32.xlu0 %v3033, 84
      %v3105 = vpop.permute.xlu0 %3104
      %3106 = vrot.lane.b32.xlu0 %v3035, 84
      %v3107 = vpop.permute.xlu0 %3106
      %3108 = vrot.lane.b32.xlu0 %v3037, 84
      %v3109 = vpop.permute.xlu0 %3108
      %3110 = vrot.lane.b32.xlu0 %v3039, 84
      %v3111 = vpop.permute.xlu0 %3110
      %3112 = vrot.lane.b32.xlu0 %v3041, 84
      %v3113 = vpop.permute.xlu0 %3112
      %3114 = vrot.lane.b32.xlu0 %v3043, 84
      %v3115 = vpop.permute.xlu0 %3114
      %3116 = vrot.lane.b32.xlu0 %v3045, 84
      %v3117 = vpop.permute.xlu0 %3116
      %3118 = vrot.lane.b32.xlu0 %v3047, 84
      %v3119 = vpop.permute.xlu0 %3118
      %3120 = vrot.lane.b32.xlu0 %v3049, 84
      %v3121 = vpop.permute.xlu0 %3120
      %3122 = vrot.lane.b32.xlu0 %v3051, 84
      %v3123 = vpop.permute.xlu0 %3122
      %3124 = vrot.lane.b32.xlu0 %v3053, 84
      %v3125 = vpop.permute.xlu0 %3124
      %3126 = vrot.lane.b32.xlu0 %v3055, 84
      %v3127 = vpop.permute.xlu0 %3126
      %3128 = vrot.lane.b32.xlu0 %v3057, 84
      %v3129 = vpop.permute.xlu0 %3128
      %3130 = vrot.lane.b32.xlu0 %v3059, 84
      %v3131 = vpop.permute.xlu0 %3130
      %3132 = vrot.lane.b32.xlu0 %v3061, 84
      %v3133 = vpop.permute.xlu0 %3132
      %3134 = vrot.lane.b32.xlu0 %v3063, 84
      %v3135 = vpop.permute.xlu0 %3134
      %3136 = vrot.lane.b32.xlu0 %v3065, 84
      %v3137 = vpop.permute.xlu0 %3136
      %3138 = vrot.lane.b32.xlu0 %v3067, 84
      %v3139 = vpop.permute.xlu0 %3138
      %3140 = vrot.lane.b32.xlu0 %v3069, 84
      %v3141 = vpop.permute.xlu0 %3140
      %3142 = vrot.lane.b32.xlu0 %v3071, 84
      %v3143 = vpop.permute.xlu0 %3142
      %3144 = vrot.lane.b32.xlu0 %v3073, 84
      %v3145 = vpop.permute.xlu0 %3144
      %3146 = vrot.lane.b32.xlu0 %v3075, 84
      %v3147 = vpop.permute.xlu0 %3146
      %3148 = vrot.lane.b32.xlu0 %v3077, 84
      %v3149 = vpop.permute.xlu0 %3148
      %3150 = vrot.lane.b32.xlu0 %v3079, 84
      %v3151 = vpop.permute.xlu0 %3150
      %3152 = vrot.lane.b32.xlu0 %v3081, 84
      %v3153 = vpop.permute.xlu0 %3152
      %3154 = vrot.lane.b32.xlu0 %v3083, 84
      %v3155 = vpop.permute.xlu0 %3154
      %3156 = vrot.lane.b32.xlu0 %v3085, 84
      %v3157 = vpop.permute.xlu0 %3156
      %3158 = vrot.lane.b32.xlu0 %v3087, 84
      %v3159 = vpop.permute.xlu0 %3158
      %3160 = vrot.lane.b32.xlu0 %v3089, 84
      %v3161 = vpop.permute.xlu0 %3160
      %v3198 = vadd.f32 %v2981, %v3091
      %v3199 = vadd.f32 %v2982, %v3093
      %v3200 = vadd.f32 %v2983, %v3095
      %v3201 = vadd.f32 %v2984, %v3097
      %v3202 = vadd.f32 %v2985, %v3099
      %v3203 = vadd.f32 %v2986, %v3101
      %v3204 = vadd.f32 %v2987, %v3103
      %v3205 = vadd.f32 %v2988, %v3105
      %v3206 = vadd.f32 %v2989, %v3107
      %v3207 = vadd.f32 %v2990, %v3109
      %v3208 = vadd.f32 %v2991, %v3111
      %v3209 = vadd.f32 %v2992, %v3113
      %v3210 = vadd.f32 %v2993, %v3115
      %v3211 = vadd.f32 %v2994, %v3117
      %v3212 = vadd.f32 %v2995, %v3119
      %v3213 = vadd.f32 %v2996, %v3121
      %v3214 = vadd.f32 %v2997, %v3123
      %v3215 = vadd.f32 %v2998, %v3125
      %v3216 = vadd.f32 %v2999, %v3127
      %v3217 = vadd.f32 %v3000, %v3129
      %v3218 = vadd.f32 %v3001, %v3131
      %v3219 = vadd.f32 %v3002, %v3133
      %v3220 = vadd.f32 %v3003, %v3135
      %v3221 = vadd.f32 %v3004, %v3137
      %v3222 = vadd.f32 %v3005, %v3139
      %v3223 = vadd.f32 %v3006, %v3141
      %v3224 = vadd.f32 %v3007, %v3143
      %v3225 = vadd.f32 %v3008, %v3145
      %v3226 = vadd.f32 %v3009, %v3147
      %v3227 = vadd.f32 %v3010, %v3149
      %v3228 = vadd.f32 %v3011, %v3151
      %v3229 = vadd.f32 %v3012, %v3153
      %v3230 = vadd.f32 %v3013, %v3155
      %v3231 = vadd.f32 %v3014, %v3157
      %v3232 = vadd.f32 %v3015, %v3159
      %v3233 = vadd.f32 %v3016, %v3161
      %v3234 = vadd.f32 %v2727, %v3198
      %v3235 = vadd.f32 %v2728, %v3199
      %v3236 = vadd.f32 %v2729, %v3200
      %v3237 = vadd.f32 %v2730, %v3201
      %v3238 = vadd.f32 %v2731, %v3202
      %v3239 = vadd.f32 %v2732, %v3203
      %v3240 = vadd.f32 %v2733, %v3204
      %v3241 = vadd.f32 %v2734, %v3205
      %v3242 = vadd.f32 %v2735, %v3206
      %v3243 = vadd.f32 %v2736, %v3207
      %v3244 = vadd.f32 %v2737, %v3208
      %v3245 = vadd.f32 %v2738, %v3209
      %v3246 = vadd.f32 %v2739, %v3210
      %v3247 = vadd.f32 %v2740, %v3211
      %v3248 = vadd.f32 %v2741, %v3212
      %v3249 = vadd.f32 %v2742, %v3213
      %v3250 = vadd.f32 %v2743, %v3214
      %v3251 = vadd.f32 %v2744, %v3215
      %v3252 = vadd.f32 %v2745, %v3216
      %v3253 = vadd.f32 %v2746, %v3217
      %v3254 = vadd.f32 %v2747, %v3218
      %v3255 = vadd.f32 %v2748, %v3219
      %v3256 = vadd.f32 %v2749, %v3220
      %v3257 = vadd.f32 %v2750, %v3221
      %v3258 = vadd.f32 %v2751, %v3222
      %v3259 = vadd.f32 %v2752, %v3223
      %v3260 = vadd.f32 %v2753, %v3224
      %v3261 = vadd.f32 %v2754, %v3225
      %v3262 = vadd.f32 %v2755, %v3226
      %v3263 = vadd.f32 %v2756, %v3227
      %v3264 = vadd.f32 %v2757, %v3228
      %v3265 = vadd.f32 %v2758, %v3229
      %v3266 = vadd.f32 %v2759, %v3230
      %v3267 = vadd.f32 %v2760, %v3231
      %v3268 = vadd.f32 %v2761, %v3232
      %v3269 = vadd.f32 %v2762, %v3233
      %3270 = vst.msk [vmem:[%s206] sm:$0xff] %vm215, %v3234
      %3271 = vst.msk [vmem:[%s206 + $0x8] sm:$0xff] %vm215, %v3235
      %3272 = vst.msk [vmem:[%s206 + $0x10] sm:$0xff] %vm215, %v3236
      %3273 = vst.msk [vmem:[%s206 + $0x18] sm:$0xff] %vm215, %v3237
      %3274 = vst.msk [vmem:[%s206 + $0x20] sm:$0xff] %vm215, %v3238
      %3275 = vst.msk [vmem:[%s206 + $0x28] sm:$0xff] %vm215, %v3239
      %3276 = vst.msk [vmem:[%s206 + $0x30] sm:$0xff] %vm215, %v3240
      %3277 = vst.msk [vmem:[%s206 + $0x38] sm:$0xff] %vm215, %v3241
      %3278 = vst.msk [vmem:[%s206 + $0x40] sm:$0xff] %vm215, %v3242
      %3279 = vst.msk [vmem:[%s206 + $0x48] sm:$0xff] %vm215, %v3243
      %3280 = vst.msk [vmem:[%s206 + $0x50] sm:$0xff] %vm215, %v3244
      %3281 = vst.msk [vmem:[%s206 + $0x58] sm:$0xff] %vm215, %v3245
      %3282 = vst.msk [vmem:[%s206 + $0x60] sm:$0xff] %vm215, %v3246
      %3283 = vst.msk [vmem:[%s206 + $0x68] sm:$0xff] %vm215, %v3247
      %3284 = vst.msk [vmem:[%s206 + $0x70] sm:$0xff] %vm215, %v3248
      %3285 = vst.msk [vmem:[%s206 + $0x78] sm:$0xff] %vm215, %v3249
      %3286 = vst.msk [vmem:[%s206 + $0x80] sm:$0xff] %vm215, %v3250
      %3287 = vst.msk [vmem:[%s206 + $0x88] sm:$0xff] %vm215, %v3251
      %3288 = vst.msk [vmem:[%s206 + $0x90] sm:$0xff] %vm215, %v3252
      %3289 = vst.msk [vmem:[%s206 + $0x98] sm:$0xff] %vm215, %v3253
      %3290 = vst.msk [vmem:[%s206 + $0xa0] sm:$0xff] %vm215, %v3254
      %3291 = vst.msk [vmem:[%s206 + $0xa8] sm:$0xff] %vm215, %v3255
      %3292 = vst.msk [vmem:[%s206 + $0xb0] sm:$0xff] %vm215, %v3256
      %3293 = vst.msk [vmem:[%s206 + $0xb8] sm:$0xff] %vm215, %v3257
      %3294 = vst.msk [vmem:[%s206 + $0xc0] sm:$0xff] %vm215, %v3258
      %3295 = vst.msk [vmem:[%s206 + $0xc8] sm:$0xff] %vm215, %v3259
      %3296 = vst.msk [vmem:[%s206 + $0xd0] sm:$0xff] %vm215, %v3260
      %3297 = vst.msk [vmem:[%s206 + $0xd8] sm:$0xff] %vm215, %v3261
      %3298 = vst.msk [vmem:[%s206 + $0xe0] sm:$0xff] %vm215, %v3262
      %3299 = vst.msk [vmem:[%s206 + $0xe8] sm:$0xff] %vm215, %v3263
      %3300 = vst.msk [vmem:[%s206 + $0xf0] sm:$0xff] %vm215, %v3264
      %3301 = vst.msk [vmem:[%s206 + $0xf8] sm:$0xff] %vm215, %v3265
      %3302 = vst.msk [vmem:[%s206 + $0x100] sm:$0xff] %vm215, %v3266
      %3303 = vst.msk [vmem:[%s206 + $0x108] sm:$0xff] %vm215, %v3267
      %3304 = vst.msk [vmem:[%s206 + $0x110] sm:$0xff] %vm215, %v3268
      %3305 = vst.msk [vmem:[%s206 + $0x118] sm:$0xff] %vm215, %v3269
      %p3306 = scmp.lt.s32.totalorder %s18, 1
      %s3307 = scalar_select %p3306, %s18, 1
      %p3308 = scmp.lt.s32.totalorder %s19, 0
      %s3309 = scalar_select %p3308, %s19, 0
      %s3310 = smul.addr %s3309, 36
      %s3311 = smul.addr %s3307, 36
      %s3312 = sadd.s32 %s3310, %s3311
      %s3313 = smul.addr %s3312, 8
      %s3314 = scalar_lea.vmem %s3, %s3313
      // Predicated region
      $region33: #{tpu_custom_call.1} parent=31 // pred_check
        %p3315 = pneg %p116
      $region34: #{tpu_custom_call.1} parent=31 // pred_check_branch
        %3317 = sbr.rel (%p3315) target = $region36
      $region35: #{tpu_custom_call.1} parent=31 // pred_region
        _
      $region36: #{tpu_custom_call.1} parent=31 // pred_fallthru
        _
    $region32: #{tpu_custom_call.1} parent=5 // pred_fallthru
      _
    %p3318 = scmp.le.s32.totalorder 2, %s9
    // Predicated region
    $region37: #{tpu_custom_call.1} parent=5 // pred_check
      %p3319 = pneg %p3318
    $region38: #{tpu_custom_call.1} parent=5 // pred_check_branch
      %3321 = sbr.rel (%p3319) target = $region40
    $region39: #{tpu_custom_call.1} parent=5 // pred_region
      %s3322 = ssub.s32 %s9, 2
      // Predicated region
      $region41: #{tpu_custom_call.1} parent=39 // pred_check
        %p3323 = pneg %p122
      $region42: #{tpu_custom_call.1} parent=39 // pred_check_branch
        %3325 = sbr.rel (%p3323) target = $region44
      $region43: #{tpu_custom_call.1} parent=39 // pred_region
        %p3326 = scmp.lt.s32.totalorder %s20, 1
        %s3327 = scalar_select %p3326, %s20, 1
        %p3328 = scmp.lt.s32.totalorder %s21, 0
        %s3329 = scalar_select %p3328, %s21, 0
        %s3330 = smul.addr %s3329, 36
        %s3331 = smul.addr %s3327, 36
        %s3332 = sadd.s32 %s3330, %s3331
        %s3333 = smul.addr %s3332, 8
        %s3334 = scalar_lea.vmem %s3, %s3333
      $region44: #{tpu_custom_call.1} parent=39 // pred_fallthru
        _
    $region40: #{tpu_custom_call.1} parent=5 // pred_fallthru
      _
  $region6: #{tpu_custom_call.1} parent=0 // loop_footer
    %s13 = sadd.s32 1, %s9
  $region7: #{tpu_custom_call.1} parent=0 // loop_footer_branch
    %8 = sbr.rel target = $region3
  $region8: #{tpu_custom_call.1} parent=0 // loop_exit
    _

</llo_original>
